<compile_context>
chip_gen: v6e
topology: v6e:2x2x1
jax: 0.10.0
libtpu: 0.0.40
codegen_flags: <defaults>
</compile_context>

<pallas_src>
import functools

import jax
import jax.numpy as jnp
from jax import lax
from jax.experimental import pallas as pl
from jax.experimental.pallas import tpu as pltpu

EPS = 1e-5


# --------------------------------------------------------------------------- #
# In-kernel helpers
# --------------------------------------------------------------------------- #
def _valid_row(t, ls, l, tps, n):
    """(1, t) f32 mask: 1.0 on lanes holding real data (sample < n, pos < l).

    Built in-kernel from iota + program_id (no mask DMAs).  `tps` is a small
    static int, so the per-sample loop unrolls into a handful of VPU compares.
    """
    tile = pl.program_id(0)
    lane = lax.broadcasted_iota(jnp.int32, (1, t), 1)
    valid = jnp.zeros((1, t), dtype=jnp.bool_)
    for j in range(tps):                                   # static unroll
        in_sample = (lane >= j * ls) & (lane < j * ls + l)
        sample_ok = (tile * tps + j) < n
        valid = valid | (in_sample & sample_ok)
    return valid.astype(jnp.float32)


def _conv3(a, w_ref, b_col, cd):
    """3-tap Conv1d: lane rolls (XLU) + three accumulating MXU dots.

    `a` is (C, T) with zero per-sample padding lanes, so the rolled-in
    neighbours at sample edges are zero -- that *is* the Conv1d zero padding.
    Activations are cast to `cd` (bf16 by default) only at the MXU boundary;
    accumulation and everything downstream stay f32.
    """
    t = a.shape[-1]
    am1 = pltpu.roll(a, 1, axis=1)        # a[:, l-1]
    ap1 = pltpu.roll(a, t - 1, axis=1)    # a[:, l+1]
    acc = jnp.dot(w_ref[0], am1.astype(cd), preferred_element_type=jnp.float32)
    acc = acc + jnp.dot(w_ref[1], a.astype(cd), preferred_element_type=jnp.float32)
    acc = acc + jnp.dot(w_ref[2], ap1.astype(cd), preferred_element_type=jnp.float32)
    return acc + b_col


def _conv_stats_kernel(x_ref, w_ref, b_ref, h_ref, s1_ref, s2_ref,
                       *, ls, l, tps, n, cd):
    """Pass A: h1 = conv1(x) + b1, plus per-tile partial BN sums of h1."""
    h = _conv3(x_ref[...], w_ref, b_ref[...], cd)          # (F, T) f32
    h_ref[...] = h
    v = _valid_row(h.shape[-1], ls, l, tps, n)
    hm = h * v
    s1_ref[...] = jnp.sum(hm, axis=1, keepdims=True)       # (F, 1)
    s2_ref[...] = jnp.sum(hm * h, axis=1, keepdims=True)   # (F, 1)


def _bn_conv_stats_kernel(h1_ref, sc1_ref, sh1_ref, w_ref, b_ref,
                          h2_ref, s1_ref, s2_ref, *, ls, l, tps, n, cd):
    """Pass B: y1 = relu(bn1(h1)) (masked), h2 = conv2(y1) + b2, partial sums."""
    v = _valid_row(h1_ref.shape[-1], ls, l, tps, n)
    # Folded BN affine: one multiply-add instead of sub/mul/mul/add.  The mask
    # re-zeroes the per-sample padding lanes so the conv2 rolls stay clean.
    y1 = jnp.maximum(h1_ref[...] * sc1_ref[...] + sh1_ref[...], 0.0) * v
    h2 = _conv3(y1, w_ref, b_ref[...], cd)
    h2_ref[...] = h2
    hm = h2 * v
    s1_ref[...] = jnp.sum(hm, axis=1, keepdims=True)
    s2_ref[...] = jnp.sum(hm * h2, axis=1, keepdims=True)


def _finalize_kernel(h1_ref, h2_ref, sc1_ref, sh1_ref, sc2_ref, sh2_ref,
                     out_ref):
    """Pass C: out = relu(bn2(h2) + y1); y1 is recomputed from h1 (cheaper than
    an extra HBM round trip of y1).  Padded lanes are sliced off by the wrapper.
    """
    y1 = jnp.maximum(h1_ref[...] * sc1_ref[...] + sh1_ref[...], 0.0)
    out_ref[...] = jnp.maximum(h2_ref[...] * sc2_ref[...] + sh2_ref[...] + y1,
                               0.0)


# --------------------------------------------------------------------------- #
# Wrapper
# --------------------------------------------------------------------------- #
def _bn_fold(s1, s2, gamma, beta, count):
    """Per-channel scale/shift from streamed partial sums (biased variance,
    training-mode BatchNorm): scale = g*rsqrt(var+eps), shift = be - mean*scale.
    """
    s1 = jnp.sum(s1, axis=0)[:, 0]                         # (F,)
    s2 = jnp.sum(s2, axis=0)[:, 0]
    mean = s1 / count
    var = s2 / count - mean * mean
    scale = gamma.astype(jnp.float32) * lax.rsqrt(var + EPS)
    shift = beta.astype(jnp.float32) - mean * scale
    return scale[:, None], shift[:, None]                  # (F, 1) columns


def residual_block(x, params, *, samples_per_tile=None,
                   compute_dtype=jnp.bfloat16):
    """ResidualBlock forward (layers=2, kernel_size=3, stride=1, padding=1,
    input_channels != num_filters).  x: (N, Cin, L) float32."""
    w1, b1, g1, be1, w2, b2, g2, be2 = params
    N, Cin, L = x.shape
    F, _, K = w1.shape
    assert K == 3 and w2.shape == (F, F, K), "kernel assumes k=3, layers=2"
    assert Cin != F, "only the first_layer=True configuration is implemented"

    # ---- layout: channels on sublanes, lanes = samples x padded length ------
    Ls = (L // 128 + 1) * 128      # per-sample lanes, strictly > L: the zero
                                   # gap is both the Conv1d zero padding and the
                                   # inter-sample barrier for the lane rolls.
    Cp = -(-Cin // 8) * 8
    if samples_per_tile is None:
        samples_per_tile = max(1, min(N, 2048 // Ls))
    tps = int(samples_per_tile)
    n_tiles = -(-N // tps)
    Np = n_tiles * tps
    T = tps * Ls                   # lanes per tile (multiple of 128)
    NLp = n_tiles * T

    xk = jnp.transpose(x, (1, 0, 2)).astype(jnp.float32)             # (Cin,N,L)
    xk = jnp.pad(xk, ((0, Cp - Cin), (0, Np - N), (0, Ls - L)))
    xk = xk.reshape(Cp, NLp)

    cd = compute_dtype
    w1k = jnp.pad(w1.astype(jnp.float32), ((0, 0), (0, Cp - Cin), (0, 0)))
    w1k = jnp.transpose(w1k, (2, 0, 1)).astype(cd)                   # (K,F,Cp)
    w2k = jnp.transpose(w2.astype(jnp.float32), (2, 0, 1)).astype(cd)  # (K,F,F)
    b1c = jnp.asarray(b1, jnp.float32)[:, None]
    b2c = jnp.asarray(b2, jnp.float32)[:, None]

    # ---- specs / compiler params --------------------------------------------
    x_spec = pl.BlockSpec((Cp, T), lambda i: (0, i))
    f_spec = pl.BlockSpec((F, T), lambda i: (0, i))                  # lane-dense
    st_spec = pl.BlockSpec((None, F, 1), lambda i: (i, 0, 0))        # per-tile
    resident = lambda a: pl.BlockSpec(a.shape, lambda i: (0,) * a.ndim)

    act_shape = jax.ShapeDtypeStruct((F, NLp), jnp.float32)
    st_shape = jax.ShapeDtypeStruct((n_tiles, F, 1), jnp.float32)

    weight_bytes = sum(int(a.size) * a.dtype.itemsize for a in (w1k, w2k))
    slab = 4 * T * (Cp + 4 * F)    # streamed per-step slabs (f32)
    cparams = pltpu.CompilerParams(
        dimension_semantics=("parallel",),   # v7x: split tile grid over 2 TCs
        # double-buffered slabs + resident weights + headroom, capped below
        # v7x's 64 MiB physical VMEM (v5e/v6e have 128 MiB and more slack).
        vmem_limit_bytes=int(min(max(4 * slab + weight_bytes + (8 << 20),
                                     32 << 20), 48 << 20)))
    stat_kw = dict(ls=Ls, l=L, tps=tps, n=N, cd=cd)

    # ---- pass A: conv1 + BN1 partial statistics ------------------------------
    h1, a1, q1 = pl.pallas_call(
        functools.partial(_conv_stats_kernel, **stat_kw),
        grid=(n_tiles,),
        in_specs=[x_spec, resident(w1k), resident(b1c)],
        out_specs=(f_spec, st_spec, st_spec),
        out_shape=(act_shape, st_shape, st_shape),
        compiler_params=cparams,
    )(xk, w1k, b1c)
    sc1, sh1 = _bn_fold(a1, q1, g1, be1, float(N * L))

    # ---- pass B: bn1 + relu, conv2 + BN2 partial statistics -------------------
    h2, a2, q2 = pl.pallas_call(
        functools.partial(_bn_conv_stats_kernel, **stat_kw),
        grid=(n_tiles,),
        in_specs=[f_spec, resident(sc1), resident(sh1),
                  resident(w2k), resident(b2c)],
        out_specs=(f_spec, st_spec, st_spec),
        out_shape=(act_shape, st_shape, st_shape),
        compiler_params=cparams,
    )(h1, sc1, sh1, w2k, b2c)
    sc2, sh2 = _bn_fold(a2, q2, g2, be2, float(N * L))

    # ---- pass C: bn2 + residual + relu ----------------------------------------
    outk = pl.pallas_call(
        _finalize_kernel,
        grid=(n_tiles,),
        in_specs=[f_spec, f_spec, resident(sc1), resident(sh1),
                  resident(sc2), resident(sh2)],
        out_specs=f_spec,
        out_shape=act_shape,
        compiler_params=cparams,
    )(h1, h2, sc1, sh1, sc2, sh2)

    # Lane-dense kernel layout -> (N, F, L); padded samples/lanes sliced off.
    out = outk.reshape(F, Np, Ls)[:, :N, :L]
    return jnp.transpose(out, (1, 0, 2))


# --------------------------------------------------------------------------- #
# Pure-JAX reference (matches the PyTorch forward, training-mode BatchNorm)
# --------------------------------------------------------------------------- #
def reference(x, params):
    w1, b1, g1, be1, w2, b2, g2, be2 = params

    def conv1d(x, w, b):
        y = lax.conv_general_dilated(
            x, w, window_strides=(1,), padding=[(1, 1)],
            dimension_numbers=('NCH', 'OIH', 'NCH'))
        return y + b[None, :, None]

    def bn(x, g, be):
        m = jnp.mean(x, axis=(0, 2), keepdims=True)
        v = jnp.mean((x - m) ** 2, axis=(0, 2), keepdims=True)
        return (x - m) / jnp.sqrt(v + EPS) * g[None, :, None] + be[None, :, None]

    h = jnp.maximum(bn(conv1d(x, w1, b1), g1, be1), 0.0)
    res = h
    h2 = bn(conv1d(h, w2, b2), g2, be2)
    return jnp.maximum(h2 + res, 0.0)


if __name__ == "__main__":
    # Small config consistent with the module: layers=2, num_filters=16,
    # kernel_size=3, stride=1, padding=1, input_channels != num_filters.
    N, Cin, L = 2, 4, 16
    F, K = 16, 3

    key = jax.random.PRNGKey(0)
    ks = jax.random.split(key, 5)
    x = jax.random.normal(ks[0], (N, Cin, L), jnp.float32)
    w1 = 0.3 * jax.random.normal(ks[1], (F, Cin, K), jnp.float32)
    b1 = 0.1 * jax.random.normal(ks[2], (F,), jnp.float32)
    w2 = 0.2 * jax.random.normal(ks[3], (F, F, K), jnp.float32)
    b2 = 0.1 * jax.random.normal(ks[4], (F,), jnp.float32)
    g1 = jnp.ones((F,), jnp.float32)   # BatchNorm1d default init
    be1 = jnp.zeros((F,), jnp.float32)
    g2 = jnp.ones((F,), jnp.float32)
    be2 = jnp.zeros((F,), jnp.float32)
    params = (w1, b1, g1, be1, w2, b2, g2, be2)

    # samples_per_tile=1 forces a 2-tile grid even at this toy size, so the
    # streaming cross-tile BatchNorm statistics path is exercised.
    fn = jax.jit(functools.partial(residual_block, samples_per_tile=1))
    out = jax.block_until_ready(fn(x, params))

    ref = reference(x, params)
    assert out.shape == (N, F, L)
    err = float(jnp.max(jnp.abs(out - ref)))
    # bf16 MXU operands (the perf-review default); tolerance reflects bf16
    # rounding through two conv+BN layers.  All BN/elementwise math is f32.
    assert jnp.allclose(out, ref, atol=4e-2, rtol=4e-2), err
    print("KERNEL_OK")
</pallas_src>

<mosaic_0001>
module attributes {stable_mosaic.version = 11 : i64} {
  func.func @_conv_stats_kernel(%arg0: i32, %arg1: memref<8x128xf32, #tpu.memory_space<vmem>>, %arg2: memref<3x16x8xbf16, #tpu.memory_space<vmem>>, %arg3: memref<16x1xf32, #tpu.memory_space<vmem>>, %arg4: memref<16x128xf32, #tpu.memory_space<vmem>>, %arg5: memref<1x16x1xf32, #tpu.memory_space<vmem>>, %arg6: memref<1x16x1xf32, #tpu.memory_space<vmem>>) attributes {dimension_semantics = [#tpu.dimension_semantics<parallel>], iteration_bounds = array<i64: 2>, scalar_prefetch = 0 : i64, scratch_operands = 0 : i64, tpu.core_type = #tpu.core_type<tc>, window_params = [{transform_indices = @transform_0, window_bounds = array<i64: 8, 128>}, {pipeline_mode = #tpu.pipeline_mode<synchronous>, transform_indices = @transform_1, window_bounds = array<i64: 3, 16, 8>}, {pipeline_mode = #tpu.pipeline_mode<synchronous>, transform_indices = @transform_2, window_bounds = array<i64: 16, 1>}, {transform_indices = @transform_3, window_bounds = array<i64: 16, 128>}, {transform_indices = @transform_4, window_bounds = array<i64: 1, 16, 1>}, {transform_indices = @transform_5, window_bounds = array<i64: 1, 16, 1>}]} {
    %c0 = arith.constant 0 : index
    %c0_0 = arith.constant 0 : index
    %0 = vector.load %arg1[%c0, %c0_0] : memref<8x128xf32, #tpu.memory_space<vmem>>, vector<8x128xf32>
    %c0_1 = arith.constant 0 : index
    %c0_2 = arith.constant 0 : index
    %1 = vector.load %arg3[%c0_1, %c0_2] : memref<16x1xf32, #tpu.memory_space<vmem>>, vector<16x1xf32>
    %c1_i32 = arith.constant 1 : i32
    %2 = tpu.dynamic_rotate %0 by %c1_i32 dim 1 : vector<8x128xf32>, i32 -> vector<8x128xf32>
    %c127_i32 = arith.constant 127 : i32
    %3 = tpu.dynamic_rotate %0 by %c127_i32 dim 1 : vector<8x128xf32>, i32 -> vector<8x128xf32>
    %c0_3 = arith.constant 0 : index
    %c0_4 = arith.constant 0 : index
    %c0_5 = arith.constant 0 : index
    %4 = vector.load %arg2[%c0_3, %c0_4, %c0_5] : memref<3x16x8xbf16, #tpu.memory_space<vmem>>, vector<1x16x8xbf16>
    %5 = vector.shape_cast %4 : vector<1x16x8xbf16> to vector<16x8xbf16>
    %6 = arith.truncf %2 : vector<8x128xf32> to vector<8x128xbf16>
    %cst = arith.constant dense<0.000000e+00> : vector<16x128xf32>
    %7 = tpu.matmul %5, %6, %cst {dimension_numbers = #tpu.dot_dimension_numbers<[1], [0], [0], [1], [0, 0, 1, 1], [], []>} : vector<16x8xbf16>, vector<8x128xbf16>, vector<16x128xf32> -> vector<16x128xf32>
    %c1 = arith.constant 1 : index
    %c0_6 = arith.constant 0 : index
    %c0_7 = arith.constant 0 : index
    %8 = vector.load %arg2[%c1, %c0_6, %c0_7] : memref<3x16x8xbf16, #tpu.memory_space<vmem>>, vector<1x16x8xbf16>
    %9 = vector.shape_cast %8 : vector<1x16x8xbf16> to vector<16x8xbf16>
    %10 = arith.truncf %0 : vector<8x128xf32> to vector<8x128xbf16>
    %cst_8 = arith.constant dense<0.000000e+00> : vector<16x128xf32>
    %11 = tpu.matmul %9, %10, %cst_8 {dimension_numbers = #tpu.dot_dimension_numbers<[1], [0], [0], [1], [0, 0, 1, 1], [], []>} : vector<16x8xbf16>, vector<8x128xbf16>, vector<16x128xf32> -> vector<16x128xf32>
    %12 = arith.addf %7, %11 : vector<16x128xf32>
    %c2 = arith.constant 2 : index
    %c0_9 = arith.constant 0 : index
    %c0_10 = arith.constant 0 : index
    %13 = vector.load %arg2[%c2, %c0_9, %c0_10] : memref<3x16x8xbf16, #tpu.memory_space<vmem>>, vector<1x16x8xbf16>
    %14 = vector.shape_cast %13 : vector<1x16x8xbf16> to vector<16x8xbf16>
    %15 = arith.truncf %3 : vector<8x128xf32> to vector<8x128xbf16>
    %cst_11 = arith.constant dense<0.000000e+00> : vector<16x128xf32>
    %16 = tpu.matmul %14, %15, %cst_11 {dimension_numbers = #tpu.dot_dimension_numbers<[1], [0], [0], [1], [0, 0, 1, 1], [], []>} : vector<16x8xbf16>, vector<8x128xbf16>, vector<16x128xf32> -> vector<16x128xf32>
    %17 = arith.addf %12, %16 : vector<16x128xf32>
    %18 = vector.broadcast %1 : vector<16x1xf32> to vector<16x128xf32>
    %19 = arith.addf %17, %18 : vector<16x128xf32>
    %c0_12 = arith.constant 0 : index
    %c0_13 = arith.constant 0 : index
    %20 = vector.load %arg4[%c0_12, %c0_13] : memref<16x128xf32, #tpu.memory_space<vmem>>, vector<16x128xf32>
    tpu.vector_store %arg4[%c0_12, %c0_13], %19 {strides = array<i32>} : memref<16x128xf32, #tpu.memory_space<vmem>>, vector<16x128xf32>,
    %21 = tpu.iota {dimensions = array<i32: 1>} : vector<1x128xi32>
    %false = arith.constant false
    %22 = vector.broadcast %false : i1 to vector<1x128xi1>
    %c0_i32 = arith.constant 0 : i32
    %23 = vector.broadcast %c0_i32 : i32 to vector<1x128xi32>
    %24 = arith.cmpi sge, %21, %23 : vector<1x128xi32>
    %c16_i32 = arith.constant 16 : i32
    %25 = vector.broadcast %c16_i32 : i32 to vector<1x128xi32>
    %26 = arith.cmpi slt, %21, %25 : vector<1x128xi32>
    %27 = arith.andi %24, %26 : vector<1x128xi1>
    %c1_i32_14 = arith.constant 1 : i32
    %28 = arith.muli %arg0, %c1_i32_14 : i32
    %c0_i32_15 = arith.constant 0 : i32
    %29 = arith.addi %28, %c0_i32_15 : i32
    %c2_i32 = arith.constant 2 : i32
    %30 = arith.cmpi slt, %29, %c2_i32 : i32
    %31 = vector.broadcast %30 : i1 to vector<1x128xi1>
    %32 = arith.andi %27, %31 : vector<1x128xi1>
    %33 = arith.ori %22, %32 : vector<1x128xi1>
    %34 = arith.extui %33 : vector<1x128xi1> to vector<1x128xi32>
    %35 = arith.sitofp %34 : vector<1x128xi32> to vector<1x128xf32>
    %36 = vector.broadcast %35 : vector<1x128xf32> to vector<16x128xf32>
    %37 = arith.mulf %19, %36 : vector<16x128xf32>
    %cst_16 = arith.constant dense<0.000000e+00> : vector<16xf32>
    %38 = vector.multi_reduction <add>, %37, %cst_16 [1] : vector<16x128xf32> to vector<16xf32>
    %39 = vector.shape_cast %38 : vector<16xf32> to vector<16x1xf32>
    %c0_17 = arith.constant 0 : index
    %c0_18 = arith.constant 0 : index
    %c0_19 = arith.constant 0 : index
    %40 = vector.load %arg5[%c0_17, %c0_18, %c0_19] : memref<1x16x1xf32, #tpu.memory_space<vmem>>, vector<1x16x1xf32>
    %41 = vector.shape_cast %40 : vector<1x16x1xf32> to vector<16x1xf32>
    %42 = vector.shape_cast %39 : vector<16x1xf32> to vector<1x16x1xf32>
    tpu.vector_store %arg5[%c0_17, %c0_18, %c0_19], %42 {strides = array<i32>} : memref<1x16x1xf32, #tpu.memory_space<vmem>>, vector<1x16x1xf32>,
    %43 = arith.mulf %37, %19 : vector<16x128xf32>
    %cst_20 = arith.constant dense<0.000000e+00> : vector<16xf32>
    %44 = vector.multi_reduction <add>, %43, %cst_20 [1] : vector<16x128xf32> to vector<16xf32>
    %45 = vector.shape_cast %44 : vector<16xf32> to vector<16x1xf32>
    %c0_21 = arith.constant 0 : index
    %c0_22 = arith.constant 0 : index
    %c0_23 = arith.constant 0 : index
    %46 = vector.load %arg6[%c0_21, %c0_22, %c0_23] : memref<1x16x1xf32, #tpu.memory_space<vmem>>, vector<1x16x1xf32>
    %47 = vector.shape_cast %46 : vector<1x16x1xf32> to vector<16x1xf32>
    %48 = vector.shape_cast %45 : vector<16x1xf32> to vector<1x16x1xf32>
    tpu.vector_store %arg6[%c0_21, %c0_22, %c0_23], %48 {strides = array<i32>} : memref<1x16x1xf32, #tpu.memory_space<vmem>>, vector<1x16x1xf32>,
    return
  }
  func.func @transform_0(%arg0: i32) -> (i32, i32) {
    %c0_i32 = arith.constant 0 : i32
    %c0_i32_0 = arith.constant 0 : i32
    return %c0_i32, %arg0 : i32, i32
  }
  func.func @transform_1(%arg0: i32) -> (i32, i32, i32) {
    %c0_i32 = arith.constant 0 : i32
    %c0_i32_0 = arith.constant 0 : i32
    %c0_i32_1 = arith.constant 0 : i32
    %c0_i32_2 = arith.constant 0 : i32
    return %c0_i32, %c0_i32_0, %c0_i32_1 : i32, i32, i32
  }
  func.func @transform_2(%arg0: i32) -> (i32, i32) {
    %c0_i32 = arith.constant 0 : i32
    %c0_i32_0 = arith.constant 0 : i32
    %c0_i32_1 = arith.constant 0 : i32
    return %c0_i32, %c0_i32_0 : i32, i32
  }
  func.func @transform_3(%arg0: i32) -> (i32, i32) {
    %c0_i32 = arith.constant 0 : i32
    %c0_i32_0 = arith.constant 0 : i32
    return %c0_i32, %arg0 : i32, i32
  }
  func.func @transform_4(%arg0: i32) -> (i32, i32, i32) {
    %c0_i32 = arith.constant 0 : i32
    %c0_i32_0 = arith.constant 0 : i32
    %c0_i32_1 = arith.constant 0 : i32
    return %arg0, %c0_i32, %c0_i32_0 : i32, i32, i32
  }
  func.func @transform_5(%arg0: i32) -> (i32, i32, i32) {
    %c0_i32 = arith.constant 0 : i32
    %c0_i32_0 = arith.constant 0 : i32
    %c0_i32_1 = arith.constant 0 : i32
    return %arg0, %c0_i32, %c0_i32_0 : i32, i32, i32
  }
}

module attributes {stable_mosaic.version = 11 : i64} {
  func.func @_finalize_kernel(%arg0: i32, %arg1: memref<16x128xf32, #tpu.memory_space<vmem>>, %arg2: memref<16x128xf32, #tpu.memory_space<vmem>>, %arg3: memref<16x1xf32, #tpu.memory_space<vmem>>, %arg4: memref<16x1xf32, #tpu.memory_space<vmem>>, %arg5: memref<16x1xf32, #tpu.memory_space<vmem>>, %arg6: memref<16x1xf32, #tpu.memory_space<vmem>>, %arg7: memref<16x128xf32, #tpu.memory_space<vmem>>) attributes {dimension_semantics = [#tpu.dimension_semantics<parallel>], iteration_bounds = array<i64: 2>, scalar_prefetch = 0 : i64, scratch_operands = 0 : i64, tpu.core_type = #tpu.core_type<tc>, window_params = [{transform_indices = @transform_0, window_bounds = array<i64: 16, 128>}, {transform_indices = @transform_1, window_bounds = array<i64: 16, 128>}, {pipeline_mode = #tpu.pipeline_mode<synchronous>, transform_indices = @transform_2, window_bounds = array<i64: 16, 1>}, {pipeline_mode = #tpu.pipeline_mode<synchronous>, transform_indices = @transform_3, window_bounds = array<i64: 16, 1>}, {pipeline_mode = #tpu.pipeline_mode<synchronous>, transform_indices = @transform_4, window_bounds = array<i64: 16, 1>}, {pipeline_mode = #tpu.pipeline_mode<synchronous>, transform_indices = @transform_5, window_bounds = array<i64: 16, 1>}, {transform_indices = @transform_6, window_bounds = array<i64: 16, 128>}]} {
    %c0 = arith.constant 0 : index
    %c0_0 = arith.constant 0 : index
    %0 = vector.load %arg1[%c0, %c0_0] : memref<16x128xf32, #tpu.memory_space<vmem>>, vector<16x128xf32>
    %c0_1 = arith.constant 0 : index
    %c0_2 = arith.constant 0 : index
    %1 = vector.load %arg3[%c0_1, %c0_2] : memref<16x1xf32, #tpu.memory_space<vmem>>, vector<16x1xf32>
    %2 = vector.broadcast %1 : vector<16x1xf32> to vector<16x128xf32>
    %3 = arith.mulf %0, %2 : vector<16x128xf32>
    %c0_3 = arith.constant 0 : index
    %c0_4 = arith.constant 0 : index
    %4 = vector.load %arg4[%c0_3, %c0_4] : memref<16x1xf32, #tpu.memory_space<vmem>>, vector<16x1xf32>
    %5 = vector.broadcast %4 : vector<16x1xf32> to vector<16x128xf32>
    %6 = arith.addf %3, %5 : vector<16x128xf32>
    %cst = arith.constant 0.000000e+00 : f32
    %7 = vector.broadcast %cst : f32 to vector<16x128xf32>
    %8 = arith.maximumf %6, %7 : vector<16x128xf32>
    %c0_5 = arith.constant 0 : index
    %c0_6 = arith.constant 0 : index
    %9 = vector.load %arg2[%c0_5, %c0_6] : memref<16x128xf32, #tpu.memory_space<vmem>>, vector<16x128xf32>
    %c0_7 = arith.constant 0 : index
    %c0_8 = arith.constant 0 : index
    %10 = vector.load %arg5[%c0_7, %c0_8] : memref<16x1xf32, #tpu.memory_space<vmem>>, vector<16x1xf32>
    %11 = vector.broadcast %10 : vector<16x1xf32> to vector<16x128xf32>
    %12 = arith.mulf %9, %11 : vector<16x128xf32>
    %c0_9 = arith.constant 0 : index
    %c0_10 = arith.constant 0 : index
    %13 = vector.load %arg6[%c0_9, %c0_10] : memref<16x1xf32, #tpu.memory_space<vmem>>, vector<16x1xf32>
    %14 = vector.broadcast %13 : vector<16x1xf32> to vector<16x128xf32>
    %15 = arith.addf %12, %14 : vector<16x128xf32>
    %16 = arith.addf %15, %8 : vector<16x128xf32>
    %cst_11 = arith.constant 0.000000e+00 : f32
    %17 = vector.broadcast %cst_11 : f32 to vector<16x128xf32>
    %18 = arith.maximumf %16, %17 : vector<16x128xf32>
    %c0_12 = arith.constant 0 : index
    %c0_13 = arith.constant 0 : index
    %19 = vector.load %arg7[%c0_12, %c0_13] : memref<16x128xf32, #tpu.memory_space<vmem>>, vector<16x128xf32>
    tpu.vector_store %arg7[%c0_12, %c0_13], %18 {strides = array<i32>} : memref<16x128xf32, #tpu.memory_space<vmem>>, vector<16x128xf32>,
    return
  }
  func.func @transform_0(%arg0: i32) -> (i32, i32) {
    %c0_i32 = arith.constant 0 : i32
    %c0_i32_0 = arith.constant 0 : i32
    return %c0_i32, %arg0 : i32, i32
  }
  func.func @transform_1(%arg0: i32) -> (i32, i32) {
    %c0_i32 = arith.constant 0 : i32
    %c0_i32_0 = arith.constant 0 : i32
    return %c0_i32, %arg0 : i32, i32
  }
  func.func @transform_2(%arg0: i32) -> (i32, i32) {
    %c0_i32 = arith.constant 0 : i32
    %c0_i32_0 = arith.constant 0 : i32
    %c0_i32_1 = arith.constant 0 : i32
    return %c0_i32, %c0_i32_0 : i32, i32
  }
  func.func @transform_3(%arg0: i32) -> (i32, i32) {
    %c0_i32 = arith.constant 0 : i32
    %c0_i32_0 = arith.constant 0 : i32
    %c0_i32_1 = arith.constant 0 : i32
    return %c0_i32, %c0_i32_0 : i32, i32
  }
  func.func @transform_4(%arg0: i32) -> (i32, i32) {
    %c0_i32 = arith.constant 0 : i32
    %c0_i32_0 = arith.constant 0 : i32
    %c0_i32_1 = arith.constant 0 : i32
    return %c0_i32, %c0_i32_0 : i32, i32
  }
  func.func @transform_5(%arg0: i32) -> (i32, i32) {
    %c0_i32 = arith.constant 0 : i32
    %c0_i32_0 = arith.constant 0 : i32
    %c0_i32_1 = arith.constant 0 : i32
    return %c0_i32, %c0_i32_0 : i32, i32
  }
  func.func @transform_6(%arg0: i32) -> (i32, i32) {
    %c0_i32 = arith.constant 0 : i32
    %c0_i32_0 = arith.constant 0 : i32
    return %c0_i32, %arg0 : i32, i32
  }
}

module attributes {stable_mosaic.version = 11 : i64} {
  func.func @_bn_conv_stats_kernel(%arg0: i32, %arg1: memref<16x128xf32, #tpu.memory_space<vmem>>, %arg2: memref<16x1xf32, #tpu.memory_space<vmem>>, %arg3: memref<16x1xf32, #tpu.memory_space<vmem>>, %arg4: memref<3x16x16xbf16, #tpu.memory_space<vmem>>, %arg5: memref<16x1xf32, #tpu.memory_space<vmem>>, %arg6: memref<16x128xf32, #tpu.memory_space<vmem>>, %arg7: memref<1x16x1xf32, #tpu.memory_space<vmem>>, %arg8: memref<1x16x1xf32, #tpu.memory_space<vmem>>) attributes {dimension_semantics = [#tpu.dimension_semantics<parallel>], iteration_bounds = array<i64: 2>, scalar_prefetch = 0 : i64, scratch_operands = 0 : i64, tpu.core_type = #tpu.core_type<tc>, window_params = [{transform_indices = @transform_0, window_bounds = array<i64: 16, 128>}, {pipeline_mode = #tpu.pipeline_mode<synchronous>, transform_indices = @transform_1, window_bounds = array<i64: 16, 1>}, {pipeline_mode = #tpu.pipeline_mode<synchronous>, transform_indices = @transform_2, window_bounds = array<i64: 16, 1>}, {pipeline_mode = #tpu.pipeline_mode<synchronous>, transform_indices = @transform_3, window_bounds = array<i64: 3, 16, 16>}, {pipeline_mode = #tpu.pipeline_mode<synchronous>, transform_indices = @transform_4, window_bounds = array<i64: 16, 1>}, {transform_indices = @transform_5, window_bounds = array<i64: 16, 128>}, {transform_indices = @transform_6, window_bounds = array<i64: 1, 16, 1>}, {transform_indices = @transform_7, window_bounds = array<i64: 1, 16, 1>}]} {
    %0 = tpu.iota {dimensions = array<i32: 1>} : vector<1x128xi32>
    %false = arith.constant false
    %1 = vector.broadcast %false : i1 to vector<1x128xi1>
    %c0_i32 = arith.constant 0 : i32
    %2 = vector.broadcast %c0_i32 : i32 to vector<1x128xi32>
    %3 = arith.cmpi sge, %0, %2 : vector<1x128xi32>
    %c16_i32 = arith.constant 16 : i32
    %4 = vector.broadcast %c16_i32 : i32 to vector<1x128xi32>
    %5 = arith.cmpi slt, %0, %4 : vector<1x128xi32>
    %6 = arith.andi %3, %5 : vector<1x128xi1>
    %c1_i32 = arith.constant 1 : i32
    %7 = arith.muli %arg0, %c1_i32 : i32
    %c0_i32_0 = arith.constant 0 : i32
    %8 = arith.addi %7, %c0_i32_0 : i32
    %c2_i32 = arith.constant 2 : i32
    %9 = arith.cmpi slt, %8, %c2_i32 : i32
    %10 = vector.broadcast %9 : i1 to vector<1x128xi1>
    %11 = arith.andi %6, %10 : vector<1x128xi1>
    %12 = arith.ori %1, %11 : vector<1x128xi1>
    %13 = arith.extui %12 : vector<1x128xi1> to vector<1x128xi32>
    %14 = arith.sitofp %13 : vector<1x128xi32> to vector<1x128xf32>
    %c0 = arith.constant 0 : index
    %c0_1 = arith.constant 0 : index
    %15 = vector.load %arg1[%c0, %c0_1] : memref<16x128xf32, #tpu.memory_space<vmem>>, vector<16x128xf32>
    %c0_2 = arith.constant 0 : index
    %c0_3 = arith.constant 0 : index
    %16 = vector.load %arg2[%c0_2, %c0_3] : memref<16x1xf32, #tpu.memory_space<vmem>>, vector<16x1xf32>
    %17 = vector.broadcast %16 : vector<16x1xf32> to vector<16x128xf32>
    %18 = arith.mulf %15, %17 : vector<16x128xf32>
    %c0_4 = arith.constant 0 : index
    %c0_5 = arith.constant 0 : index
    %19 = vector.load %arg3[%c0_4, %c0_5] : memref<16x1xf32, #tpu.memory_space<vmem>>, vector<16x1xf32>
    %20 = vector.broadcast %19 : vector<16x1xf32> to vector<16x128xf32>
    %21 = arith.addf %18, %20 : vector<16x128xf32>
    %cst = arith.constant 0.000000e+00 : f32
    %22 = vector.broadcast %cst : f32 to vector<16x128xf32>
    %23 = arith.maximumf %21, %22 : vector<16x128xf32>
    %24 = vector.broadcast %14 : vector<1x128xf32> to vector<16x128xf32>
    %25 = arith.mulf %23, %24 : vector<16x128xf32>
    %c0_6 = arith.constant 0 : index
    %c0_7 = arith.constant 0 : index
    %26 = vector.load %arg5[%c0_6, %c0_7] : memref<16x1xf32, #tpu.memory_space<vmem>>, vector<16x1xf32>
    %c1_i32_8 = arith.constant 1 : i32
    %27 = tpu.dynamic_rotate %25 by %c1_i32_8 dim 1 : vector<16x128xf32>, i32 -> vector<16x128xf32>
    %c127_i32 = arith.constant 127 : i32
    %28 = tpu.dynamic_rotate %25 by %c127_i32 dim 1 : vector<16x128xf32>, i32 -> vector<16x128xf32>
    %c0_9 = arith.constant 0 : index
    %c0_10 = arith.constant 0 : index
    %c0_11 = arith.constant 0 : index
    %29 = vector.load %arg4[%c0_9, %c0_10, %c0_11] : memref<3x16x16xbf16, #tpu.memory_space<vmem>>, vector<1x16x16xbf16>
    %30 = vector.shape_cast %29 : vector<1x16x16xbf16> to vector<16x16xbf16>
    %31 = arith.truncf %27 : vector<16x128xf32> to vector<16x128xbf16>
    %cst_12 = arith.constant dense<0.000000e+00> : vector<16x128xf32>
    %32 = tpu.matmul %30, %31, %cst_12 {dimension_numbers = #tpu.dot_dimension_numbers<[1], [0], [0], [1], [0, 0, 1, 1], [], []>} : vector<16x16xbf16>, vector<16x128xbf16>, vector<16x128xf32> -> vector<16x128xf32>
    %c1 = arith.constant 1 : index
    %c0_13 = arith.constant 0 : index
    %c0_14 = arith.constant 0 : index
    %33 = vector.load %arg4[%c1, %c0_13, %c0_14] : memref<3x16x16xbf16, #tpu.memory_space<vmem>>, vector<1x16x16xbf16>
    %34 = vector.shape_cast %33 : vector<1x16x16xbf16> to vector<16x16xbf16>
    %35 = arith.truncf %25 : vector<16x128xf32> to vector<16x128xbf16>
    %cst_15 = arith.constant dense<0.000000e+00> : vector<16x128xf32>
    %36 = tpu.matmul %34, %35, %cst_15 {dimension_numbers = #tpu.dot_dimension_numbers<[1], [0], [0], [1], [0, 0, 1, 1], [], []>} : vector<16x16xbf16>, vector<16x128xbf16>, vector<16x128xf32> -> vector<16x128xf32>
    %37 = arith.addf %32, %36 : vector<16x128xf32>
    %c2 = arith.constant 2 : index
    %c0_16 = arith.constant 0 : index
    %c0_17 = arith.constant 0 : index
    %38 = vector.load %arg4[%c2, %c0_16, %c0_17] : memref<3x16x16xbf16, #tpu.memory_space<vmem>>, vector<1x16x16xbf16>
    %39 = vector.shape_cast %38 : vector<1x16x16xbf16> to vector<16x16xbf16>
    %40 = arith.truncf %28 : vector<16x128xf32> to vector<16x128xbf16>
    %cst_18 = arith.constant dense<0.000000e+00> : vector<16x128xf32>
    %41 = tpu.matmul %39, %40, %cst_18 {dimension_numbers = #tpu.dot_dimension_numbers<[1], [0], [0], [1], [0, 0, 1, 1], [], []>} : vector<16x16xbf16>, vector<16x128xbf16>, vector<16x128xf32> -> vector<16x128xf32>
    %42 = arith.addf %37, %41 : vector<16x128xf32>
    %43 = vector.broadcast %26 : vector<16x1xf32> to vector<16x128xf32>
    %44 = arith.addf %42, %43 : vector<16x128xf32>
    %c0_19 = arith.constant 0 : index
    %c0_20 = arith.constant 0 : index
    %45 = vector.load %arg6[%c0_19, %c0_20] : memref<16x128xf32, #tpu.memory_space<vmem>>, vector<16x128xf32>
    tpu.vector_store %arg6[%c0_19, %c0_20], %44 {strides = array<i32>} : memref<16x128xf32, #tpu.memory_space<vmem>>, vector<16x128xf32>,
    %46 = vector.broadcast %14 : vector<1x128xf32> to vector<16x128xf32>
    %47 = arith.mulf %44, %46 : vector<16x128xf32>
    %cst_21 = arith.constant dense<0.000000e+00> : vector<16xf32>
    %48 = vector.multi_reduction <add>, %47, %cst_21 [1] : vector<16x128xf32> to vector<16xf32>
    %49 = vector.shape_cast %48 : vector<16xf32> to vector<16x1xf32>
    %c0_22 = arith.constant 0 : index
    %c0_23 = arith.constant 0 : index
    %c0_24 = arith.constant 0 : index
    %50 = vector.load %arg7[%c0_22, %c0_23, %c0_24] : memref<1x16x1xf32, #tpu.memory_space<vmem>>, vector<1x16x1xf32>
    %51 = vector.shape_cast %50 : vector<1x16x1xf32> to vector<16x1xf32>
    %52 = vector.shape_cast %49 : vector<16x1xf32> to vector<1x16x1xf32>
    tpu.vector_store %arg7[%c0_22, %c0_23, %c0_24], %52 {strides = array<i32>} : memref<1x16x1xf32, #tpu.memory_space<vmem>>, vector<1x16x1xf32>,
    %53 = arith.mulf %47, %44 : vector<16x128xf32>
    %cst_25 = arith.constant dense<0.000000e+00> : vector<16xf32>
    %54 = vector.multi_reduction <add>, %53, %cst_25 [1] : vector<16x128xf32> to vector<16xf32>
    %55 = vector.shape_cast %54 : vector<16xf32> to vector<16x1xf32>
    %c0_26 = arith.constant 0 : index
    %c0_27 = arith.constant 0 : index
    %c0_28 = arith.constant 0 : index
    %56 = vector.load %arg8[%c0_26, %c0_27, %c0_28] : memref<1x16x1xf32, #tpu.memory_space<vmem>>, vector<1x16x1xf32>
    %57 = vector.shape_cast %56 : vector<1x16x1xf32> to vector<16x1xf32>
    %58 = vector.shape_cast %55 : vector<16x1xf32> to vector<1x16x1xf32>
    tpu.vector_store %arg8[%c0_26, %c0_27, %c0_28], %58 {strides = array<i32>} : memref<1x16x1xf32, #tpu.memory_space<vmem>>, vector<1x16x1xf32>,
    return
  }
  func.func @transform_0(%arg0: i32) -> (i32, i32) {
    %c0_i32 = arith.constant 0 : i32
    %c0_i32_0 = arith.constant 0 : i32
    return %c0_i32, %arg0 : i32, i32
  }
  func.func @transform_1(%arg0: i32) -> (i32, i32) {
    %c0_i32 = arith.constant 0 : i32
    %c0_i32_0 = arith.constant 0 : i32
    %c0_i32_1 = arith.constant 0 : i32
    return %c0_i32, %c0_i32_0 : i32, i32
  }
  func.func @transform_2(%arg0: i32) -> (i32, i32) {
    %c0_i32 = arith.constant 0 : i32
    %c0_i32_0 = arith.constant 0 : i32
    %c0_i32_1 = arith.constant 0 : i32
    return %c0_i32, %c0_i32_0 : i32, i32
  }
  func.func @transform_3(%arg0: i32) -> (i32, i32, i32) {
    %c0_i32 = arith.constant 0 : i32
    %c0_i32_0 = arith.constant 0 : i32
    %c0_i32_1 = arith.constant 0 : i32
    %c0_i32_2 = arith.constant 0 : i32
    return %c0_i32, %c0_i32_0, %c0_i32_1 : i32, i32, i32
  }
  func.func @transform_4(%arg0: i32) -> (i32, i32) {
    %c0_i32 = arith.constant 0 : i32
    %c0_i32_0 = arith.constant 0 : i32
    %c0_i32_1 = arith.constant 0 : i32
    return %c0_i32, %c0_i32_0 : i32, i32
  }
  func.func @transform_5(%arg0: i32) -> (i32, i32) {
    %c0_i32 = arith.constant 0 : i32
    %c0_i32_0 = arith.constant 0 : i32
    return %c0_i32, %arg0 : i32, i32
  }
  func.func @transform_6(%arg0: i32) -> (i32, i32, i32) {
    %c0_i32 = arith.constant 0 : i32
    %c0_i32_0 = arith.constant 0 : i32
    %c0_i32_1 = arith.constant 0 : i32
    return %arg0, %c0_i32, %c0_i32_0 : i32, i32, i32
  }
  func.func @transform_7(%arg0: i32) -> (i32, i32, i32) {
    %c0_i32 = arith.constant 0 : i32
    %c0_i32_0 = arith.constant 0 : i32
    %c0_i32_1 = arith.constant 0 : i32
    return %arg0, %c0_i32, %c0_i32_0 : i32, i32, i32
  }
}

</mosaic_0001>

<llo_original>
// kernel: residual_block.5
$region0: #{residual_block.5}
  #allocation0 [shape = 'u32[]', space=smem, size = 0x4, offset = 0x4, fixed_abs, tag = 'smem constant byte address 0x4 - core index']
  #allocation1 [shape = 'u32[144,128]{1,0:T(1,128)}', space=vmem, size = 0x12000, scoped, tag = 'internal scratch']
  %s0 = inlined_call_operand.vmem [shape: f32[16,256], index: 0, kind: input, shape index: {}]
  %s1 = inlined_call_operand.vmem [shape: f32[16,256], index: 1, kind: input, shape index: {}]
  %s2 = inlined_call_operand.vmem [shape: f32[16,1], index: 2, kind: input, shape index: {}]
  %s3 = inlined_call_operand.vmem [shape: f32[16,1], index: 3, kind: input, shape index: {}]
  %s4 = inlined_call_operand.vmem [shape: f32[16,1], index: 4, kind: input, shape index: {}]
  %s5 = inlined_call_operand.vmem [shape: f32[16,1], index: 5, kind: input, shape index: {}]
  %s6 = inlined_call_operand.vmem [shape: f32[16,256], index: 6, kind: output, shape index: {}]
  %s7 = sld [smem:[#allocation0]]
  $region167: #{residual_block.5} parent=0
    _
  %s9 = ssub.s32 1, %s7
  %s10 = scalar_select 0, %s9, %s7
  $region1: #{residual_block.5} parent=0
    #allocation2 [shape = 'u8[16384]{0}', space=vmem, size = 0x4000, scoped, tag = 'input window, operand 0']
    #allocation3 [shape = 'u8[16384]{0}', space=vmem, size = 0x4000, scoped, tag = 'input window, operand 1']
    #allocation4 [shape = 'u8[16384]{0}', space=vmem, size = 0x4000, scoped, tag = 'output window, operand 0']
    loop: start=0, step=1, limit=4
    $region2: #{residual_block.5} parent=1 // loop_pre_header
      _
    $region3: #{residual_block.5} parent=1 // loop_header
      %s12 = sphi 0, %s16
      %p13 = scmp.ge.s32.totalorder %s12, 4
      %s22 = sphi 0, %s24
      %s25 = sphi 0, %s22
      %s26 = sphi 0, %s25
      %s42 = sphi 0, %s26
      %s48 = sphi 0, %s50
      %s51 = sphi 0, %s48
      %s52 = sphi 0, %s51
      %s68 = sphi 0, %s52
      %s72 = sphi 0, %s72
      %s74 = sphi 0, %s72
      %s75 = sphi 0, %s74
      %s89 = sphi 0, %s75
      %s93 = sphi 0, %s93
      %s95 = sphi 0, %s93
      %s96 = sphi 0, %s95
      %s110 = sphi 0, %s96
      %s114 = sphi 0, %s114
      %s116 = sphi 0, %s114
      %s117 = sphi 0, %s116
      %s131 = sphi 0, %s117
      %s135 = sphi 0, %s135
      %s137 = sphi 0, %s135
      %s138 = sphi 0, %s137
      %s152 = sphi 0, %s138
      %s158 = sphi 0, %s160
      %s161 = sphi 0, %s158
      %s162 = sphi 0, %s161
      %s178 = sphi 0, %s162
    $region4: #{residual_block.5} parent=1 // loop_header_branch
      %15 = sbr.rel (%p13) target = $region8
    $region5: #{residual_block.5} parent=1 // loop_body
      %s17 = ssub.s32 %s12, 1
      %s18 = ssub.s32 %s12, 2
      %s19 = sadd.s32 %s12, 1
      %s20 = ssub.s32 %s12, %s19
      %p21 = scmp.eq.s32.totalorder %s20, 0
      %s23 = sadd.s32 %s22, 1
      %s24 = scalar_select %p21, %s22, %s23
      %p27 = pneg %p21
      %p28 = scmp.eq.s32.totalorder %s12, 1
      %p29 = por %p27, %p28
      %p30 = scmp.ne.s32.totalorder %s22, %s25
      %p31 = scmp.eq.s32.totalorder %s12, 0
      %p32 = por %p30, %p31
      %p33 = scmp.ne.s32.totalorder %s22, %s25
      %p34 = scmp.eq.s32.totalorder %s17, 1
      %p35 = por %p33, %p34
      %p36 = scmp.ne.s32.totalorder %s25, %s26
      %p37 = scmp.eq.s32.totalorder %s17, 0
      %p38 = por %p36, %p37
      %p39 = scmp.ne.s32.totalorder %s25, %s26
      %p40 = scmp.eq.s32.totalorder %s18, 1
      %p41 = por %p39, %p40
      %p43 = scmp.ne.s32.totalorder %s26, %s42
      %p44 = scmp.eq.s32.totalorder %s18, 0
      %p45 = por %p43, %p44
      %s46 = ssub.s32 %s12, %s19
      %p47 = scmp.eq.s32.totalorder %s46, 0
      %s49 = sadd.s32 %s48, 1
      %s50 = scalar_select %p47, %s48, %s49
      %p53 = pneg %p47
      %p54 = scmp.eq.s32.totalorder %s12, 1
      %p55 = por %p53, %p54
      %p56 = scmp.ne.s32.totalorder %s48, %s51
      %p57 = scmp.eq.s32.totalorder %s12, 0
      %p58 = por %p56, %p57
      %p59 = scmp.ne.s32.totalorder %s48, %s51
      %p60 = scmp.eq.s32.totalorder %s17, 1
      %p61 = por %p59, %p60
      %p62 = scmp.ne.s32.totalorder %s51, %s52
      %p63 = scmp.eq.s32.totalorder %s17, 0
      %p64 = por %p62, %p63
      %p65 = scmp.ne.s32.totalorder %s51, %s52
      %p66 = scmp.eq.s32.totalorder %s18, 1
      %p67 = por %p65, %p66
      %p69 = scmp.ne.s32.totalorder %s52, %s68
      %p70 = scmp.eq.s32.totalorder %s18, 0
      %p71 = por %p69, %p70
      %s73 = sadd.s32 %s72, 1
      %p76 = scmp.eq.s32.totalorder %s12, 1
      %p77 = scmp.ne.s32.totalorder %s72, %s74
      %p78 = scmp.eq.s32.totalorder %s12, 0
      %p79 = por %p77, %p78
      %p80 = scmp.ne.s32.totalorder %s72, %s74
      %p81 = scmp.eq.s32.totalorder %s17, 1
      %p82 = por %p80, %p81
      %p83 = scmp.ne.s32.totalorder %s74, %s75
      %p84 = scmp.eq.s32.totalorder %s17, 0
      %p85 = por %p83, %p84
      %p86 = scmp.ne.s32.totalorder %s74, %s75
      %p87 = scmp.eq.s32.totalorder %s18, 1
      %p88 = por %p86, %p87
      %p90 = scmp.ne.s32.totalorder %s75, %s89
      %p91 = scmp.eq.s32.totalorder %s18, 0
      %p92 = por %p90, %p91
      %s94 = sadd.s32 %s93, 1
      %p97 = scmp.eq.s32.totalorder %s12, 1
      %p98 = scmp.ne.s32.totalorder %s93, %s95
      %p99 = scmp.eq.s32.totalorder %s12, 0
      %p100 = por %p98, %p99
      %p101 = scmp.ne.s32.totalorder %s93, %s95
      %p102 = scmp.eq.s32.totalorder %s17, 1
      %p103 = por %p101, %p102
      %p104 = scmp.ne.s32.totalorder %s95, %s96
      %p105 = scmp.eq.s32.totalorder %s17, 0
      %p106 = por %p104, %p105
      %p107 = scmp.ne.s32.totalorder %s95, %s96
      %p108 = scmp.eq.s32.totalorder %s18, 1
      %p109 = por %p107, %p108
      %p111 = scmp.ne.s32.totalorder %s96, %s110
      %p112 = scmp.eq.s32.totalorder %s18, 0
      %p113 = por %p111, %p112
      %s115 = sadd.s32 %s114, 1
      %p118 = scmp.eq.s32.totalorder %s12, 1
      %p119 = scmp.ne.s32.totalorder %s114, %s116
      %p120 = scmp.eq.s32.totalorder %s12, 0
      %p121 = por %p119, %p120
      %p122 = scmp.ne.s32.totalorder %s114, %s116
      %p123 = scmp.eq.s32.totalorder %s17, 1
      %p124 = por %p122, %p123
      %p125 = scmp.ne.s32.totalorder %s116, %s117
      %p126 = scmp.eq.s32.totalorder %s17, 0
      %p127 = por %p125, %p126
      %p128 = scmp.ne.s32.totalorder %s116, %s117
      %p129 = scmp.eq.s32.totalorder %s18, 1
      %p130 = por %p128, %p129
      %p132 = scmp.ne.s32.totalorder %s117, %s131
      %p133 = scmp.eq.s32.totalorder %s18, 0
      %p134 = por %p132, %p133
      %s136 = sadd.s32 %s135, 1
      %p139 = scmp.eq.s32.totalorder %s12, 1
      %p140 = scmp.ne.s32.totalorder %s135, %s137
      %p141 = scmp.eq.s32.totalorder %s12, 0
      %p142 = por %p140, %p141
      %p143 = scmp.ne.s32.totalorder %s135, %s137
      %p144 = scmp.eq.s32.totalorder %s17, 1
      %p145 = por %p143, %p144
      %p146 = scmp.ne.s32.totalorder %s137, %s138
      %p147 = scmp.eq.s32.totalorder %s17, 0
      %p148 = por %p146, %p147
      %p149 = scmp.ne.s32.totalorder %s137, %s138
      %p150 = scmp.eq.s32.totalorder %s18, 1
      %p151 = por %p149, %p150
      %p153 = scmp.ne.s32.totalorder %s138, %s152
      %p154 = scmp.eq.s32.totalorder %s18, 0
      %p155 = por %p153, %p154
      %s156 = ssub.s32 %s12, %s19
      %p157 = scmp.eq.s32.totalorder %s156, 0
      %s159 = sadd.s32 %s158, 1
      %s160 = scalar_select %p157, %s158, %s159
      %p163 = pneg %p157
      %p164 = scmp.eq.s32.totalorder %s12, 1
      %p165 = por %p163, %p164
      %p166 = scmp.ne.s32.totalorder %s158, %s161
      %p167 = scmp.eq.s32.totalorder %s12, 0
      %p168 = por %p166, %p167
      %p169 = scmp.ne.s32.totalorder %s158, %s161
      %p170 = scmp.eq.s32.totalorder %s17, 1
      %p171 = por %p169, %p170
      %p172 = scmp.ne.s32.totalorder %s161, %s162
      %p173 = scmp.eq.s32.totalorder %s17, 0
      %p174 = por %p172, %p173
      %p175 = scmp.ne.s32.totalorder %s161, %s162
      %p176 = scmp.eq.s32.totalorder %s18, 1
      %p177 = por %p175, %p176
      %p179 = scmp.ne.s32.totalorder %s162, %s178
      %p180 = scmp.eq.s32.totalorder %s18, 0
      %p181 = por %p179, %p180
      %p182 = scmp.le.s32.totalorder 1, %s12
      %p183 = scmp.lt.s32.totalorder %s12, 3
      %p184 = pnand %p182, %p183
      %p185 = pneg %p184
      // Predicated region
      $region9: #{residual_block.5} parent=5 // pred_check
        _
      $region10: #{residual_block.5} parent=5 // pred_check_branch
        %187 = sbr.rel (%p184) target = $region12
      $region11: #{residual_block.5} parent=5 // pred_region
        %s188 = ssub.s32 %s12, 1
        // Predicated region
        $region13: #{residual_block.5} parent=11 // pred_check
          %p189 = pneg %p85
        $region14: #{residual_block.5} parent=11 // pred_check_branch
          %191 = sbr.rel (%p189) target = $region16
        $region15: #{residual_block.5} parent=11 // pred_region
          _
        $region16: #{residual_block.5} parent=11 // pred_fallthru
          _
        // Predicated region
        $region17: #{residual_block.5} parent=11 // pred_check
          %p192 = pneg %p106
        $region18: #{residual_block.5} parent=11 // pred_check_branch
          %194 = sbr.rel (%p192) target = $region20
        $region19: #{residual_block.5} parent=11 // pred_region
          _
        $region20: #{residual_block.5} parent=11 // pred_fallthru
          _
        // Predicated region
        $region21: #{residual_block.5} parent=11 // pred_check
          %p195 = pneg %p127
        $region22: #{residual_block.5} parent=11 // pred_check_branch
          %197 = sbr.rel (%p195) target = $region24
        $region23: #{residual_block.5} parent=11 // pred_region
          _
        $region24: #{residual_block.5} parent=11 // pred_fallthru
          _
        // Predicated region
        $region25: #{residual_block.5} parent=11 // pred_check
          %p198 = pneg %p148
        $region26: #{residual_block.5} parent=11 // pred_check_branch
          %200 = sbr.rel (%p198) target = $region28
        $region27: #{residual_block.5} parent=11 // pred_region
          _
        $region28: #{residual_block.5} parent=11 // pred_fallthru
          _
      $region12: #{residual_block.5} parent=5 // pred_fallthru
        _
      %p201 = scmp.lt.s32.totalorder %s12, 2
      // Predicated region
      $region29: #{residual_block.5} parent=5 // pred_check
        %p202 = pneg %p201
      $region30: #{residual_block.5} parent=5 // pred_check_branch
        %204 = sbr.rel (%p202) target = $region32
      $region31: #{residual_block.5} parent=5 // pred_region
        // Predicated region
        $region33: #{residual_block.5} parent=31 // pred_check
          %p205 = pneg %p32
        $region34: #{residual_block.5} parent=31 // pred_check_branch
          %207 = sbr.rel (%p205) target = $region36
        $region35: #{residual_block.5} parent=31 // pred_region
          %s208 = sand.u32 %s22, 1
          %s209 = sand.u32 %s22, 1
          %s210 = smul.addr %s209, 16
          %s211 = scalar_lea.vmem [#allocation2], %s210
          %s212 = smul.addr %s12, 8
          %s213 = scalar_lea.vmem %s0, %s212
          // Predicated region
          $region37: #{residual_block.5} parent=35 // pred_check
            _
          $region38: #{residual_block.5} parent=35 // pred_check_branch
            %215 = sbr.rel (0) target = $region40
          $region39: #{residual_block.5} parent=35 // pred_region
            // Predicated region
            $region41: #{residual_block.5} parent=39 // pred_check
              _
            $region42: #{residual_block.5} parent=39 // pred_check_branch
              %217 = sbr.rel (0) target = $region44
            $region43: #{residual_block.5} parent=39 // pred_region
              // Predicated region
              $region56: #{residual_block.5} parent=43 // pred_check
                _
              $region57: #{residual_block.5} parent=43 // pred_check_branch
                %235 = sbr.rel (0) target = $region59
              $region58: #{residual_block.5} parent=43 // pred_region
                loop: start=0, step=1, limit=1
                $region60: #{residual_block.5} parent=58 // loop_pre_header
                  _
                $region61: #{residual_block.5} parent=58 // loop_header
                  %s237 = sphi 0, %s241
                  %p238 = scmp.ge.s32.totalorder %s237, 1
                  %s242 = sphi %s213, %s213
                  %s243 = sphi %s211, %s211
                $region62: #{residual_block.5} parent=58 // loop_header_branch
                  %240 = sbr.rel (%p238) target = $region66
                $region63: #{residual_block.5} parent=58 // loop_body
                  %v244 = vld [vmem:[%s242] sm:$0xff]
                  %245 = vst [vmem:[%s243] sm:$0xff] %v244
                  %v246 = vld [vmem:[%s242 + $0x10] sm:$0xff]
                  %247 = vst [vmem:[%s243 + $0x8] sm:$0xff] %v246
                $region64: #{residual_block.5} parent=58 // loop_footer
                  %s241 = sadd.s32 1, %s237
                $region65: #{residual_block.5} parent=58 // loop_footer_branch
                  %236 = sbr.rel target = $region61
                $region66: #{residual_block.5} parent=58 // loop_exit
                  _
              $region59: #{residual_block.5} parent=43 // pred_fallthru
                _
              // Predicated region
              $region67: #{residual_block.5} parent=43 // pred_check
                _
              $region68: #{residual_block.5} parent=43 // pred_check_branch
                %249 = sbr.rel target = $region70
              $region69: #{residual_block.5} parent=43 // pred_region
                _
              $region70: #{residual_block.5} parent=43 // pred_fallthru
                _
            $region44: #{residual_block.5} parent=39 // pred_fallthru
              _
            // Predicated region
            $region45: #{residual_block.5} parent=39 // pred_check
              _
            $region46: #{residual_block.5} parent=39 // pred_check_branch
              %219 = sbr.rel target = $region48
            $region47: #{residual_block.5} parent=39 // pred_region
              %s221 = ssub.s32 256, 1
              loop: start=0, step=1, limit=1
              $region49: #{residual_block.5} parent=47 // loop_pre_header
                _
              $region50: #{residual_block.5} parent=47 // loop_header
                %s223 = sphi 0, %s227
                %p224 = scmp.ge.s32.totalorder %s223, 1
                %s228 = sphi %s213, %s213
                %s229 = sphi %s211, %s211
              $region51: #{residual_block.5} parent=47 // loop_header_branch
                %226 = sbr.rel (%p224) target = $region55
              $region52: #{residual_block.5} parent=47 // loop_body
                %v230 = vld [vmem:[%s228] sm:%s221]
                %231 = vst [vmem:[%s229] sm:%s221] %v230
                %v232 = vld [vmem:[%s228 + $0x10] sm:%s221]
                %233 = vst [vmem:[%s229 + $0x8] sm:%s221] %v232
              $region53: #{residual_block.5} parent=47 // loop_footer
                %s227 = sadd.s32 1, %s223
              $region54: #{residual_block.5} parent=47 // loop_footer_branch
                %222 = sbr.rel target = $region50
              $region55: #{residual_block.5} parent=47 // loop_exit
                _
            $region48: #{residual_block.5} parent=39 // pred_fallthru
              _
          $region40: #{residual_block.5} parent=35 // pred_fallthru
            _
          %250 = vnop
        $region36: #{residual_block.5} parent=31 // pred_fallthru
          _
        // Predicated region
        $region71: #{residual_block.5} parent=31 // pred_check
          %p251 = pneg %p58
        $region72: #{residual_block.5} parent=31 // pred_check_branch
          %253 = sbr.rel (%p251) target = $region74
        $region73: #{residual_block.5} parent=31 // pred_region
          %s254 = sand.u32 %s48, 1
          %s255 = sand.u32 %s48, 1
          %s256 = smul.addr %s255, 16
          %s257 = scalar_lea.vmem [#allocation3], %s256
          %s258 = smul.addr %s12, 8
          %s259 = scalar_lea.vmem %s1, %s258
          // Predicated region
          $region75: #{residual_block.5} parent=73 // pred_check
            _
          $region76: #{residual_block.5} parent=73 // pred_check_branch
            %261 = sbr.rel (0) target = $region78
          $region77: #{residual_block.5} parent=73 // pred_region
            // Predicated region
            $region79: #{residual_block.5} parent=77 // pred_check
              _
            $region80: #{residual_block.5} parent=77 // pred_check_branch
              %263 = sbr.rel (0) target = $region82
            $region81: #{residual_block.5} parent=77 // pred_region
              // Predicated region
              $region94: #{residual_block.5} parent=81 // pred_check
                _
              $region95: #{residual_block.5} parent=81 // pred_check_branch
                %281 = sbr.rel (0) target = $region97
              $region96: #{residual_block.5} parent=81 // pred_region
                loop: start=0, step=1, limit=1
                $region98: #{residual_block.5} parent=96 // loop_pre_header
                  _
                $region99: #{residual_block.5} parent=96 // loop_header
                  %s283 = sphi 0, %s287
                  %p284 = scmp.ge.s32.totalorder %s283, 1
                  %s288 = sphi %s259, %s259
                  %s289 = sphi %s257, %s257
                $region100: #{residual_block.5} parent=96 // loop_header_branch
                  %286 = sbr.rel (%p284) target = $region104
                $region101: #{residual_block.5} parent=96 // loop_body
                  %v290 = vld [vmem:[%s288] sm:$0xff]
                  %291 = vst [vmem:[%s289] sm:$0xff] %v290
                  %v292 = vld [vmem:[%s288 + $0x10] sm:$0xff]
                  %293 = vst [vmem:[%s289 + $0x8] sm:$0xff] %v292
                $region102: #{residual_block.5} parent=96 // loop_footer
                  %s287 = sadd.s32 1, %s283
                $region103: #{residual_block.5} parent=96 // loop_footer_branch
                  %282 = sbr.rel target = $region99
                $region104: #{residual_block.5} parent=96 // loop_exit
                  _
              $region97: #{residual_block.5} parent=81 // pred_fallthru
                _
              // Predicated region
              $region105: #{residual_block.5} parent=81 // pred_check
                _
              $region106: #{residual_block.5} parent=81 // pred_check_branch
                %295 = sbr.rel target = $region108
              $region107: #{residual_block.5} parent=81 // pred_region
                _
              $region108: #{residual_block.5} parent=81 // pred_fallthru
                _
            $region82: #{residual_block.5} parent=77 // pred_fallthru
              _
            // Predicated region
            $region83: #{residual_block.5} parent=77 // pred_check
              _
            $region84: #{residual_block.5} parent=77 // pred_check_branch
              %265 = sbr.rel target = $region86
            $region85: #{residual_block.5} parent=77 // pred_region
              %s267 = ssub.s32 256, 1
              loop: start=0, step=1, limit=1
              $region87: #{residual_block.5} parent=85 // loop_pre_header
                _
              $region88: #{residual_block.5} parent=85 // loop_header
                %s269 = sphi 0, %s273
                %p270 = scmp.ge.s32.totalorder %s269, 1
                %s274 = sphi %s259, %s259
                %s275 = sphi %s257, %s257
              $region89: #{residual_block.5} parent=85 // loop_header_branch
                %272 = sbr.rel (%p270) target = $region93
              $region90: #{residual_block.5} parent=85 // loop_body
                %v276 = vld [vmem:[%s274] sm:%s267]
                %277 = vst [vmem:[%s275] sm:%s267] %v276
                %v278 = vld [vmem:[%s274 + $0x10] sm:%s267]
                %279 = vst [vmem:[%s275 + $0x8] sm:%s267] %v278
              $region91: #{residual_block.5} parent=85 // loop_footer
                %s273 = sadd.s32 1, %s269
              $region92: #{residual_block.5} parent=85 // loop_footer_branch
                %268 = sbr.rel target = $region88
              $region93: #{residual_block.5} parent=85 // loop_exit
                _
            $region86: #{residual_block.5} parent=77 // pred_fallthru
              _
          $region78: #{residual_block.5} parent=73 // pred_fallthru
            _
          %296 = vnop
        $region74: #{residual_block.5} parent=31 // pred_fallthru
          _
      $region32: #{residual_block.5} parent=5 // pred_fallthru
        _
      %p297 = scmp.le.s32.totalorder 1, %s12
      %p298 = scmp.lt.s32.totalorder %s12, 3
      %p299 = pnand %p297, %p298
      %p300 = pneg %p299
      // Predicated region
      $region109: #{residual_block.5} parent=5 // pred_check
        _
      $region110: #{residual_block.5} parent=5 // pred_check_branch
        %302 = sbr.rel (%p299) target = $region112
      $region111: #{residual_block.5} parent=5 // pred_region
        %s303 = ssub.s32 %s12, 1
        %s304 = sand.u32 %s25, 1
        %s305 = sand.u32 %s25, 1
        %s306 = smul.addr %s305, 16
        %s307 = scalar_lea.vmem [#allocation2], %s306
        // Predicated region
        $region113: #{residual_block.5} parent=111 // pred_check
          %p308 = pneg %p38
        $region114: #{residual_block.5} parent=111 // pred_check_branch
          %310 = sbr.rel (%p308) target = $region116
        $region115: #{residual_block.5} parent=111 // pred_region
          _
        $region116: #{residual_block.5} parent=111 // pred_fallthru
          _
        %s311 = sand.u32 %s51, 1
        %s312 = sand.u32 %s51, 1
        %s313 = smul.addr %s312, 16
        %s314 = scalar_lea.vmem [#allocation3], %s313
        // Predicated region
        $region117: #{residual_block.5} parent=111 // pred_check
          %p315 = pneg %p64
        $region118: #{residual_block.5} parent=111 // pred_check_branch
          %317 = sbr.rel (%p315) target = $region120
        $region119: #{residual_block.5} parent=111 // pred_region
          _
        $region120: #{residual_block.5} parent=111 // pred_fallthru
          _
        %s318 = sand.u32 %s25, 1
        %s319 = sand.u32 %s25, 1
        %s320 = smul.addr %s319, 16
        %s321 = scalar_lea.vmem [#allocation2], %s320
        %p322 = pneg %p38
        %p323 = pneg %p35
        %s324 = sand.u32 %s51, 1
        %s325 = sand.u32 %s51, 1
        %s326 = smul.addr %s325, 16
        %s327 = scalar_lea.vmem [#allocation3], %s326
        %p328 = pneg %p64
        %p329 = pneg %p61
        %p330 = pneg %p85
        %p331 = pneg %p82
        %p332 = pneg %p106
        %p333 = pneg %p103
        %p334 = pneg %p127
        %p335 = pneg %p124
        %p336 = pneg %p148
        %p337 = pneg %p145
        %p338 = pneg %p174
        %p339 = pneg %p171
        %s340 = sand.u32 %s161, 1
        %s341 = sand.u32 %s161, 1
        %s342 = smul.addr %s341, 16
        %s343 = scalar_lea.vmem [#allocation4], %s342
        %v344 = vld [vmem:[%s307] sm:$0xff]
        %v345 = vld [vmem:[%s307 + $0x8] sm:$0xff]
        %v346 = vld [vmem:[%s2] sm:$0xff]
        %v347 = vld [vmem:[%s2 + $0x8] sm:$0xff]
        %349 = vset.pattern.permute.xlu0 0
        %350 = vperm.xlu0 %349, %v346
        %v351 = vpop.permute.xlu0 %350
        %354 = vset.pattern.permute.xlu0 0
        %355 = vperm.xlu0 %354, %v347
        %v356 = vpop.permute.xlu0 %355
        %v358 = vmul.f32 %v344, %v351
        %v359 = vmul.f32 %v345, %v356
        %v360 = vld [vmem:[%s3] sm:$0xff]
        %v361 = vld [vmem:[%s3 + $0x8] sm:$0xff]
        %363 = vset.pattern.permute.xlu0 0
        %364 = vperm.xlu0 %363, %v360
        %v365 = vpop.permute.xlu0 %364
        %368 = vset.pattern.permute.xlu0 0
        %369 = vperm.xlu0 %368, %v361
        %v370 = vpop.permute.xlu0 %369
        %v372 = vadd.f32 %v358, %v365
        %v373 = vadd.f32 %v359, %v370
        %v374 = vmax.f32 %v372, 0.0
        %v375 = vmax.f32 %v373, 0.0
        %v376 = vld [vmem:[%s314] sm:$0xff]
        %v377 = vld [vmem:[%s314 + $0x8] sm:$0xff]
        %v378 = vld [vmem:[%s4] sm:$0xff]
        %v379 = vld [vmem:[%s4 + $0x8] sm:$0xff]
        %381 = vset.pattern.permute.xlu0 0
        %382 = vperm.xlu0 %381, %v378
        %v383 = vpop.permute.xlu0 %382
        %386 = vset.pattern.permute.xlu0 0
        %387 = vperm.xlu0 %386, %v379
        %v388 = vpop.permute.xlu0 %387
        %v390 = vmul.f32 %v376, %v383
        %v391 = vmul.f32 %v377, %v388
        %v392 = vld [vmem:[%s5] sm:$0xff]
        %v393 = vld [vmem:[%s5 + $0x8] sm:$0xff]
        %395 = vset.pattern.permute.xlu0 0
        %396 = vperm.xlu0 %395, %v392
        %v397 = vpop.permute.xlu0 %396
        %400 = vset.pattern.permute.xlu0 0
        %401 = vperm.xlu0 %400, %v393
        %v402 = vpop.permute.xlu0 %401
        %v404 = vadd.f32 %v390, %v397
        %v405 = vadd.f32 %v391, %v402
        %v406 = vadd.f32 %v404, %v374
        %v407 = vadd.f32 %v405, %v375
        %v408 = vmax.f32 %v406, 0.0
        %v409 = vmax.f32 %v407, 0.0
        %410 = vst [vmem:[%s343] sm:$0xff] %v408
        %411 = vst [vmem:[%s343 + $0x8] sm:$0xff] %v409
        %s412 = sand.u32 %s161, 1
        %s413 = sand.u32 %s161, 1
        %s414 = smul.addr %s413, 16
        %s415 = scalar_lea.vmem [#allocation4], %s414
        // Predicated region
        $region121: #{residual_block.5} parent=111 // pred_check
          %p416 = pneg %p171
        $region122: #{residual_block.5} parent=111 // pred_check_branch
          %418 = sbr.rel (%p416) target = $region124
        $region123: #{residual_block.5} parent=111 // pred_region
          %s419 = smul.addr %s17, 8
          %s420 = scalar_lea.vmem %s6, %s419
          // Predicated region
          $region125: #{residual_block.5} parent=123 // pred_check
            _
          $region126: #{residual_block.5} parent=123 // pred_check_branch
            %422 = sbr.rel (0) target = $region128
          $region127: #{residual_block.5} parent=123 // pred_region
            // Predicated region
            $region129: #{residual_block.5} parent=127 // pred_check
              _
            $region130: #{residual_block.5} parent=127 // pred_check_branch
              %424 = sbr.rel (0) target = $region132
            $region131: #{residual_block.5} parent=127 // pred_region
              // Predicated region
              $region144: #{residual_block.5} parent=131 // pred_check
                _
              $region145: #{residual_block.5} parent=131 // pred_check_branch
                %442 = sbr.rel (0) target = $region147
              $region146: #{residual_block.5} parent=131 // pred_region
                loop: start=0, step=1, limit=1
                $region148: #{residual_block.5} parent=146 // loop_pre_header
                  _
                $region149: #{residual_block.5} parent=146 // loop_header
                  %s444 = sphi 0, %s448
                  %p445 = scmp.ge.s32.totalorder %s444, 1
                  %s449 = sphi %s415, %s415
                  %s450 = sphi %s420, %s420
                $region150: #{residual_block.5} parent=146 // loop_header_branch
                  %447 = sbr.rel (%p445) target = $region154
                $region151: #{residual_block.5} parent=146 // loop_body
                  %v451 = vld [vmem:[%s449] sm:$0xff]
                  %452 = vst [vmem:[%s450] sm:$0xff] %v451
                  %v453 = vld [vmem:[%s449 + $0x8] sm:$0xff]
                  %454 = vst [vmem:[%s450 + $0x10] sm:$0xff] %v453
                $region152: #{residual_block.5} parent=146 // loop_footer
                  %s448 = sadd.s32 1, %s444
                $region153: #{residual_block.5} parent=146 // loop_footer_branch
                  %443 = sbr.rel target = $region149
                $region154: #{residual_block.5} parent=146 // loop_exit
                  _
              $region147: #{residual_block.5} parent=131 // pred_fallthru
                _
              // Predicated region
              $region155: #{residual_block.5} parent=131 // pred_check
                _
              $region156: #{residual_block.5} parent=131 // pred_check_branch
                %456 = sbr.rel target = $region158
              $region157: #{residual_block.5} parent=131 // pred_region
                _
              $region158: #{residual_block.5} parent=131 // pred_fallthru
                _
            $region132: #{residual_block.5} parent=127 // pred_fallthru
              _
            // Predicated region
            $region133: #{residual_block.5} parent=127 // pred_check
              _
            $region134: #{residual_block.5} parent=127 // pred_check_branch
              %426 = sbr.rel target = $region136
            $region135: #{residual_block.5} parent=127 // pred_region
              %s428 = ssub.s32 256, 1
              loop: start=0, step=1, limit=1
              $region137: #{residual_block.5} parent=135 // loop_pre_header
                _
              $region138: #{residual_block.5} parent=135 // loop_header
                %s430 = sphi 0, %s434
                %p431 = scmp.ge.s32.totalorder %s430, 1
                %s435 = sphi %s415, %s415
                %s436 = sphi %s420, %s420
              $region139: #{residual_block.5} parent=135 // loop_header_branch
                %433 = sbr.rel (%p431) target = $region143
              $region140: #{residual_block.5} parent=135 // loop_body
                %v437 = vld [vmem:[%s435] sm:%s428]
                %438 = vst [vmem:[%s436] sm:%s428] %v437
                %v439 = vld [vmem:[%s435 + $0x8] sm:%s428]
                %440 = vst [vmem:[%s436 + $0x10] sm:%s428] %v439
              $region141: #{residual_block.5} parent=135 // loop_footer
                %s434 = sadd.s32 1, %s430
              $region142: #{residual_block.5} parent=135 // loop_footer_branch
                %429 = sbr.rel target = $region138
              $region143: #{residual_block.5} parent=135 // loop_exit
                _
            $region136: #{residual_block.5} parent=127 // pred_fallthru
              _
          $region128: #{residual_block.5} parent=123 // pred_fallthru
            _
          %457 = vnop
        $region124: #{residual_block.5} parent=111 // pred_fallthru
          _
      $region112: #{residual_block.5} parent=5 // pred_fallthru
        _
      %p458 = scmp.le.s32.totalorder 2, %s12
      // Predicated region
      $region159: #{residual_block.5} parent=5 // pred_check
        %p459 = pneg %p458
      $region160: #{residual_block.5} parent=5 // pred_check_branch
        %461 = sbr.rel (%p459) target = $region162
      $region161: #{residual_block.5} parent=5 // pred_region
        %s462 = ssub.s32 %s12, 2
        // Predicated region
        $region163: #{residual_block.5} parent=161 // pred_check
          %p463 = pneg %p177
        $region164: #{residual_block.5} parent=161 // pred_check_branch
          %465 = sbr.rel (%p463) target = $region166
        $region165: #{residual_block.5} parent=161 // pred_region
          %s466 = sand.u32 %s162, 1
          %s467 = sand.u32 %s162, 1
          %s468 = smul.addr %s467, 16
          %s469 = scalar_lea.vmem [#allocation4], %s468
        $region166: #{residual_block.5} parent=161 // pred_fallthru
          _
      $region162: #{residual_block.5} parent=5 // pred_fallthru
        _
    $region6: #{residual_block.5} parent=1 // loop_footer
      %s16 = sadd.s32 1, %s12
    $region7: #{residual_block.5} parent=1 // loop_footer_branch
      %11 = sbr.rel target = $region3
    $region8: #{residual_block.5} parent=1 // loop_exit
      _

// kernel: residual_block.3
$region0: #{residual_block.3}
  #allocation0 [shape = 'u32[]', space=smem, size = 0x4, offset = 0x4, fixed_abs, tag = 'smem constant byte address 0x4 - core index']
  #allocation1 [shape = 'u32[144,128]{1,0:T(1,128)}', space=vmem, size = 0x12000, scoped, tag = 'internal scratch']
  %s0 = inlined_call_operand.vmem [shape: f32[8,256], index: 0, kind: input, shape index: {}]
  %s1 = inlined_call_operand.vmem [shape: bf16[3,16,8], index: 1, kind: input, shape index: {}]
  %s2 = inlined_call_operand.vmem [shape: f32[16,1], index: 2, kind: input, shape index: {}]
  %s3 = inlined_call_operand.vmem [shape: f32[16,256], index: 3, kind: output, shape index: {0}]
  %s4 = inlined_call_operand.vmem [shape: f32[2,16,1], index: 4, kind: output, shape index: {1}]
  %s5 = inlined_call_operand.vmem [shape: f32[2,16,1], index: 5, kind: output, shape index: {2}]
  %6 = xla_tuple %s3, %s4, %s5
  %s7 = sld [smem:[#allocation0]]
  $region95: #{residual_block.3} parent=0
    _
  %s9 = ssub.s32 1, %s7
  %s10 = scalar_select 0, %s9, %s7
  $region1: #{residual_block.3} parent=0
    #allocation2 [shape = 'u8[16384]{0}', space=vmem, size = 0x4000, scoped, tag = 'output window, operand 0']
    loop: start=0, step=1, limit=4
    $region2: #{residual_block.3} parent=1 // loop_pre_header
      _
    $region3: #{residual_block.3} parent=1 // loop_header
      %s12 = sphi 0, %s16
      %p13 = scmp.ge.s32.totalorder %s12, 4
      %s22 = sphi 0, %s24
      %s25 = sphi 0, %s22
      %s26 = sphi 0, %s25
      %s42 = sphi 0, %s26
      %s46 = sphi 0, %s46
      %s48 = sphi 0, %s46
      %s49 = sphi 0, %s48
      %s63 = sphi 0, %s49
      %s67 = sphi 0, %s67
      %s69 = sphi 0, %s67
      %s70 = sphi 0, %s69
      %s84 = sphi 0, %s70
      %s90 = sphi 0, %s92
      %s93 = sphi 0, %s90
      %s94 = sphi 0, %s93
      %s110 = sphi 0, %s94
      %s116 = sphi 0, %s118
      %s119 = sphi 0, %s116
      %s120 = sphi 0, %s119
      %s136 = sphi 0, %s120
      %s142 = sphi 0, %s144
      %s145 = sphi 0, %s142
      %s146 = sphi 0, %s145
      %s162 = sphi 0, %s146
    $region4: #{residual_block.3} parent=1 // loop_header_branch
      %15 = sbr.rel (%p13) target = $region8
    $region5: #{residual_block.3} parent=1 // loop_body
      %s17 = ssub.s32 %s12, 1
      %s18 = ssub.s32 %s12, 2
      %s19 = sadd.s32 %s12, 1
      %s20 = ssub.s32 %s12, %s19
      %p21 = scmp.eq.s32.totalorder %s20, 0
      %s23 = sadd.s32 %s22, 1
      %s24 = scalar_select %p21, %s22, %s23
      %p27 = pneg %p21
      %p28 = scmp.eq.s32.totalorder %s12, 1
      %p29 = por %p27, %p28
      %p30 = scmp.ne.s32.totalorder %s22, %s25
      %p31 = scmp.eq.s32.totalorder %s12, 0
      %p32 = por %p30, %p31
      %p33 = scmp.ne.s32.totalorder %s22, %s25
      %p34 = scmp.eq.s32.totalorder %s17, 1
      %p35 = por %p33, %p34
      %p36 = scmp.ne.s32.totalorder %s25, %s26
      %p37 = scmp.eq.s32.totalorder %s17, 0
      %p38 = por %p36, %p37
      %p39 = scmp.ne.s32.totalorder %s25, %s26
      %p40 = scmp.eq.s32.totalorder %s18, 1
      %p41 = por %p39, %p40
      %p43 = scmp.ne.s32.totalorder %s26, %s42
      %p44 = scmp.eq.s32.totalorder %s18, 0
      %p45 = por %p43, %p44
      %s47 = sadd.s32 %s46, 1
      %p50 = scmp.eq.s32.totalorder %s12, 1
      %p51 = scmp.ne.s32.totalorder %s46, %s48
      %p52 = scmp.eq.s32.totalorder %s12, 0
      %p53 = por %p51, %p52
      %p54 = scmp.ne.s32.totalorder %s46, %s48
      %p55 = scmp.eq.s32.totalorder %s17, 1
      %p56 = por %p54, %p55
      %p57 = scmp.ne.s32.totalorder %s48, %s49
      %p58 = scmp.eq.s32.totalorder %s17, 0
      %p59 = por %p57, %p58
      %p60 = scmp.ne.s32.totalorder %s48, %s49
      %p61 = scmp.eq.s32.totalorder %s18, 1
      %p62 = por %p60, %p61
      %p64 = scmp.ne.s32.totalorder %s49, %s63
      %p65 = scmp.eq.s32.totalorder %s18, 0
      %p66 = por %p64, %p65
      %s68 = sadd.s32 %s67, 1
      %p71 = scmp.eq.s32.totalorder %s12, 1
      %p72 = scmp.ne.s32.totalorder %s67, %s69
      %p73 = scmp.eq.s32.totalorder %s12, 0
      %p74 = por %p72, %p73
      %p75 = scmp.ne.s32.totalorder %s67, %s69
      %p76 = scmp.eq.s32.totalorder %s17, 1
      %p77 = por %p75, %p76
      %p78 = scmp.ne.s32.totalorder %s69, %s70
      %p79 = scmp.eq.s32.totalorder %s17, 0
      %p80 = por %p78, %p79
      %p81 = scmp.ne.s32.totalorder %s69, %s70
      %p82 = scmp.eq.s32.totalorder %s18, 1
      %p83 = por %p81, %p82
      %p85 = scmp.ne.s32.totalorder %s70, %s84
      %p86 = scmp.eq.s32.totalorder %s18, 0
      %p87 = por %p85, %p86
      %s88 = ssub.s32 %s12, %s19
      %p89 = scmp.eq.s32.totalorder %s88, 0
      %s91 = sadd.s32 %s90, 1
      %s92 = scalar_select %p89, %s90, %s91
      %p95 = pneg %p89
      %p96 = scmp.eq.s32.totalorder %s12, 1
      %p97 = por %p95, %p96
      %p98 = scmp.ne.s32.totalorder %s90, %s93
      %p99 = scmp.eq.s32.totalorder %s12, 0
      %p100 = por %p98, %p99
      %p101 = scmp.ne.s32.totalorder %s90, %s93
      %p102 = scmp.eq.s32.totalorder %s17, 1
      %p103 = por %p101, %p102
      %p104 = scmp.ne.s32.totalorder %s93, %s94
      %p105 = scmp.eq.s32.totalorder %s17, 0
      %p106 = por %p104, %p105
      %p107 = scmp.ne.s32.totalorder %s93, %s94
      %p108 = scmp.eq.s32.totalorder %s18, 1
      %p109 = por %p107, %p108
      %p111 = scmp.ne.s32.totalorder %s94, %s110
      %p112 = scmp.eq.s32.totalorder %s18, 0
      %p113 = por %p111, %p112
      %s114 = ssub.s32 %s12, %s19
      %p115 = scmp.eq.s32.totalorder %s114, 0
      %s117 = sadd.s32 %s116, 1
      %s118 = scalar_select %p115, %s116, %s117
      %p121 = pneg %p115
      %p122 = scmp.eq.s32.totalorder %s12, 1
      %p123 = por %p121, %p122
      %p124 = scmp.ne.s32.totalorder %s116, %s119
      %p125 = scmp.eq.s32.totalorder %s12, 0
      %p126 = por %p124, %p125
      %p127 = scmp.ne.s32.totalorder %s116, %s119
      %p128 = scmp.eq.s32.totalorder %s17, 1
      %p129 = por %p127, %p128
      %p130 = scmp.ne.s32.totalorder %s119, %s120
      %p131 = scmp.eq.s32.totalorder %s17, 0
      %p132 = por %p130, %p131
      %p133 = scmp.ne.s32.totalorder %s119, %s120
      %p134 = scmp.eq.s32.totalorder %s18, 1
      %p135 = por %p133, %p134
      %p137 = scmp.ne.s32.totalorder %s120, %s136
      %p138 = scmp.eq.s32.totalorder %s18, 0
      %p139 = por %p137, %p138
      %s140 = ssub.s32 %s12, %s19
      %p141 = scmp.eq.s32.totalorder %s140, 0
      %s143 = sadd.s32 %s142, 1
      %s144 = scalar_select %p141, %s142, %s143
      %p147 = pneg %p141
      %p148 = scmp.eq.s32.totalorder %s12, 1
      %p149 = por %p147, %p148
      %p150 = scmp.ne.s32.totalorder %s142, %s145
      %p151 = scmp.eq.s32.totalorder %s12, 0
      %p152 = por %p150, %p151
      %p153 = scmp.ne.s32.totalorder %s142, %s145
      %p154 = scmp.eq.s32.totalorder %s17, 1
      %p155 = por %p153, %p154
      %p156 = scmp.ne.s32.totalorder %s145, %s146
      %p157 = scmp.eq.s32.totalorder %s17, 0
      %p158 = por %p156, %p157
      %p159 = scmp.ne.s32.totalorder %s145, %s146
      %p160 = scmp.eq.s32.totalorder %s18, 1
      %p161 = por %p159, %p160
      %p163 = scmp.ne.s32.totalorder %s146, %s162
      %p164 = scmp.eq.s32.totalorder %s18, 0
      %p165 = por %p163, %p164
      %p166 = scmp.le.s32.totalorder 1, %s12
      %p167 = scmp.lt.s32.totalorder %s12, 3
      %p168 = pnand %p166, %p167
      %p169 = pneg %p168
      // Predicated region
      $region9: #{residual_block.3} parent=5 // pred_check
        _
      $region10: #{residual_block.3} parent=5 // pred_check_branch
        %171 = sbr.rel (%p168) target = $region12
      $region11: #{residual_block.3} parent=5 // pred_region
        %s172 = ssub.s32 %s12, 1
        // Predicated region
        $region13: #{residual_block.3} parent=11 // pred_check
          %p173 = pneg %p59
        $region14: #{residual_block.3} parent=11 // pred_check_branch
          %175 = sbr.rel (%p173) target = $region16
        $region15: #{residual_block.3} parent=11 // pred_region
          _
        $region16: #{residual_block.3} parent=11 // pred_fallthru
          _
        // Predicated region
        $region17: #{residual_block.3} parent=11 // pred_check
          %p176 = pneg %p80
        $region18: #{residual_block.3} parent=11 // pred_check_branch
          %178 = sbr.rel (%p176) target = $region20
        $region19: #{residual_block.3} parent=11 // pred_region
          _
        $region20: #{residual_block.3} parent=11 // pred_fallthru
          _
      $region12: #{residual_block.3} parent=5 // pred_fallthru
        _
      %p179 = scmp.lt.s32.totalorder %s12, 2
      // Predicated region
      $region21: #{residual_block.3} parent=5 // pred_check
        %p180 = pneg %p179
      $region22: #{residual_block.3} parent=5 // pred_check_branch
        %182 = sbr.rel (%p180) target = $region24
      $region23: #{residual_block.3} parent=5 // pred_region
        // Predicated region
        $region25: #{residual_block.3} parent=23 // pred_check
          %p183 = pneg %p32
        $region26: #{residual_block.3} parent=23 // pred_check_branch
          %185 = sbr.rel (%p183) target = $region28
        $region27: #{residual_block.3} parent=23 // pred_region
          %p186 = scmp.lt.s32.totalorder %s12, 1
          %s187 = scalar_select %p186, %s12, 1
          %s188 = smul.addr %s187, 8
          %s189 = scalar_lea.vmem %s0, %s188
        $region28: #{residual_block.3} parent=23 // pred_fallthru
          _
      $region24: #{residual_block.3} parent=5 // pred_fallthru
        _
      %p190 = scmp.le.s32.totalorder 1, %s12
      %p191 = scmp.lt.s32.totalorder %s12, 3
      %p192 = pnand %p190, %p191
      %p193 = pneg %p192
      // Predicated region
      $region29: #{residual_block.3} parent=5 // pred_check
        _
      $region30: #{residual_block.3} parent=5 // pred_check_branch
        %195 = sbr.rel (%p192) target = $region32
      $region31: #{residual_block.3} parent=5 // pred_region
        %s196 = ssub.s32 %s12, 1
        %p197 = scmp.lt.s32.totalorder %s17, 1
        %s198 = scalar_select %p197, %s17, 1
        %s199 = smul.addr %s198, 8
        %s200 = scalar_lea.vmem %s0, %s199
        %p201 = pneg %p38
        %p202 = pneg %p35
        %p203 = pneg %p59
        %p204 = pneg %p56
        %p205 = pneg %p80
        %p206 = pneg %p77
        %p207 = pneg %p106
        %p208 = pneg %p103
        %s209 = sand.u32 %s93, 1
        %s210 = sand.u32 %s93, 1
        %s211 = smul.addr %s210, 16
        %s212 = scalar_lea.vmem [#allocation2], %s211
        %p213 = pneg %p132
        %p214 = pneg %p129
        %p215 = scmp.lt.s32.totalorder %s17, 1
        %s216 = scalar_select %p215, %s17, 1
        %s217 = smul.addr %s216, 2
        %s218 = smul.addr %s217, 8
        %s219 = scalar_lea.vmem %s4, %s218
        %p220 = pneg %p158
        %p221 = pneg %p155
        %p222 = scmp.lt.s32.totalorder %s17, 1
        %s223 = scalar_select %p222, %s17, 1
        %s224 = smul.addr %s223, 2
        %s225 = smul.addr %s224, 8
        %s226 = scalar_lea.vmem %s5, %s225
        %p227 = scmp.lt.s32.totalorder %s17, 1
        %s228 = scalar_select %p227, %s17, 1
        %s229 = smul.addr %s228, 8
        %s230 = scalar_lea.vmem %s0, %s229
        %p231 = scmp.lt.s32.totalorder %s17, 1
        %s232 = scalar_select %p231, %s17, 1
        %s233 = smul.addr %s232, 2
        %s234 = smul.addr %s233, 8
        %s235 = scalar_lea.vmem %s4, %s234
        %p236 = scmp.lt.s32.totalorder %s17, 1
        %s237 = scalar_select %p236, %s17, 1
        %s238 = smul.addr %s237, 2
        %s239 = smul.addr %s238, 8
        %s240 = scalar_lea.vmem %s5, %s239
        %v242 = vld [vmem:[%s230] sm:$0xff]
        %v243 = vld [vmem:[%s2] sm:$0xff]
        %v244 = vld [vmem:[%s2 + $0x8] sm:$0xff]
        %245 = vrot.lane.b32.xlu0 %v242, 1
        %v246 = vpop.permute.xlu0 %245
        %247 = vrot.lane.b32.xlu0 %v242, 127
        %v248 = vpop.permute.xlu0 %247
        %v249 = vld [vmem:[%s1] sm:$0xf]
        %v250 = vld [vmem:[%s1 + $0x4] sm:$0xf]
        %v251 = vpack.c.bf16 %v246, %v246
        %s252 = scalar_lea.vmem %s1, 8
        %v253 = vld [vmem:[%s252] sm:$0xf]
        %v254 = vld [vmem:[%s252 + $0x4] sm:$0xf]
        %v255 = vpack.c.bf16 %v242, %v242
        %v258 = vunpack.c.l.b16 %v253
        %v259 = vunpack.c.l.b16 %v254
        %v260 = vpack.c.b16 %v259, %v258
        %vm261 = vcmask 64512
        %v263 = vsel %vm261, %v260, 0
        %vm265 = vcmask 1043456
        %v267 = vsel %vm265, %v255, 0
        %269 = vmatprep.subr.bf16.mxu0 0
        %270 = vmatpush1.bf16.msra.mxu0 0
        %271 = vmatprep.subr.bf16.mxu0 0
        %272 = vmatpush1.bf16.msra.mxu0 0
        %273 = vmatprep.subr.bf16.mxu0 0
        %274 = vmatpush1.bf16.msra.mxu0 0
        %275 = vmatprep.subr.bf16.mxu0 0
        %276 = vmatpush1.bf16.msra.mxu0 0
        %277 = vmatprep.subr.bf16.mxu0 0
        %278 = vmatpush1.bf16.msra.mxu0 0
        %279 = vmatprep.subr.bf16.mxu0 0
        %280 = vmatpush1.bf16.msra.mxu0 0
        %281 = vmatprep.subr.bf16.mxu0 0
        %282 = vmatpush1.bf16.msra.mxu0 0
        %283 = vmatprep.subr.bf16.mxu0 0
        %284 = vmatpush1.bf16.msra.mxu0 %v267
        %285 = vmatprep.subr.bf16.mxu0 0
        %286 = vmatpush2.bf16.msra.mxu0 0
        %287 = vmatprep.subr.bf16.mxu0 0
        %288 = vmatpush2.bf16.msra.mxu0 0
        %289 = vmatprep.subr.bf16.mxu0 0
        %290 = vmatpush2.bf16.msra.mxu0 0
        %291 = vmatprep.subr.bf16.mxu0 0
        %292 = vmatpush2.bf16.msra.mxu0 0
        %293 = vmatprep.subr.bf16.mxu0 0
        %294 = vmatpush2.bf16.msra.mxu0 0
        %295 = vmatprep.subr.bf16.mxu0 0
        %296 = vmatpush2.bf16.msra.mxu0 0
        %297 = vmatprep.subr.bf16.mxu0 0
        %298 = vmatpush2.bf16.msra.mxu0 0
        %299 = vmatprep.subr.bf16.mxu0 0
        %300 = vmatpush2.bf16.msra.mxu0 0
        %301 = vmatprep.mubr.bf16.mxu0 0
        %302 = vmatmul.mubr.bf16.gmra.mxu0 %v263
        %v303 = vpop.f32.mrf.mxu0
        %v304 = vadd.f32 0.0, %v303
        %v305 = vpop.f32.mrf.mxu0
        %v306 = vpop.f32.mrf.mxu0
        %v307 = vadd.f32 0.0, %v306
        %v308 = vpop.f32.mrf.mxu0
        %309 = vdwg.mxu0
        %v312 = vunpack.c.l.b16 %v249
        %v313 = vunpack.c.l.b16 %v250
        %v314 = vpack.c.b16 %v313, %v312
        %v316 = vsel %vm261, %v314, 0
        %v319 = vsel %vm265, %v251, 0
        %321 = vmatprep.subr.bf16.mxu0 0
        %322 = vmatpush1.bf16.msra.mxu0 0
        %323 = vmatprep.subr.bf16.mxu0 0
        %324 = vmatpush1.bf16.msra.mxu0 0
        %325 = vmatprep.subr.bf16.mxu0 0
        %326 = vmatpush1.bf16.msra.mxu0 0
        %327 = vmatprep.subr.bf16.mxu0 0
        %328 = vmatpush1.bf16.msra.mxu0 0
        %329 = vmatprep.subr.bf16.mxu0 0
        %330 = vmatpush1.bf16.msra.mxu0 0
        %331 = vmatprep.subr.bf16.mxu0 0
        %332 = vmatpush1.bf16.msra.mxu0 0
        %333 = vmatprep.subr.bf16.mxu0 0
        %334 = vmatpush1.bf16.msra.mxu0 0
        %335 = vmatprep.subr.bf16.mxu0 0
        %336 = vmatpush1.bf16.msra.mxu0 %v319
        %337 = vmatprep.subr.bf16.mxu0 0
        %338 = vmatpush2.bf16.msra.mxu0 0
        %339 = vmatprep.subr.bf16.mxu0 0
        %340 = vmatpush2.bf16.msra.mxu0 0
        %341 = vmatprep.subr.bf16.mxu0 0
        %342 = vmatpush2.bf16.msra.mxu0 0
        %343 = vmatprep.subr.bf16.mxu0 0
        %344 = vmatpush2.bf16.msra.mxu0 0
        %345 = vmatprep.subr.bf16.mxu0 0
        %346 = vmatpush2.bf16.msra.mxu0 0
        %347 = vmatprep.subr.bf16.mxu0 0
        %348 = vmatpush2.bf16.msra.mxu0 0
        %349 = vmatprep.subr.bf16.mxu0 0
        %350 = vmatpush2.bf16.msra.mxu0 0
        %351 = vmatprep.subr.bf16.mxu0 0
        %352 = vmatpush2.bf16.msra.mxu0 0
        %353 = vmatprep.mubr.bf16.mxu0 0
        %354 = vmatmul.mubr.bf16.gmra.mxu0 %v316
        %v355 = vpop.f32.mrf.mxu0
        %v356 = vadd.f32 %v304, %v355
        %v357 = vpop.f32.mrf.mxu0
        %v358 = vpop.f32.mrf.mxu0
        %v359 = vadd.f32 %v307, %v358
        %v360 = vpop.f32.mrf.mxu0
        %361 = vdwg.mxu0
        %s362 = scalar_lea.vmem %s1, 16
        %v363 = vld [vmem:[%s362] sm:$0xf]
        %v364 = vld [vmem:[%s362 + $0x4] sm:$0xf]
        %v365 = vpack.c.bf16 %v248, %v248
        %v368 = vunpack.c.l.b16 %v363
        %v369 = vunpack.c.l.b16 %v364
        %v370 = vpack.c.b16 %v369, %v368
        %v372 = vsel %vm261, %v370, 0
        %v375 = vsel %vm265, %v365, 0
        %377 = vmatprep.subr.bf16.mxu0 0
        %378 = vmatpush1.bf16.msra.mxu0 0
        %379 = vmatprep.subr.bf16.mxu0 0
        %380 = vmatpush1.bf16.msra.mxu0 0
        %381 = vmatprep.subr.bf16.mxu0 0
        %382 = vmatpush1.bf16.msra.mxu0 0
        %383 = vmatprep.subr.bf16.mxu0 0
        %384 = vmatpush1.bf16.msra.mxu0 0
        %385 = vmatprep.subr.bf16.mxu0 0
        %386 = vmatpush1.bf16.msra.mxu0 0
        %387 = vmatprep.subr.bf16.mxu0 0
        %388 = vmatpush1.bf16.msra.mxu0 0
        %389 = vmatprep.subr.bf16.mxu0 0
        %390 = vmatpush1.bf16.msra.mxu0 0
        %391 = vmatprep.subr.bf16.mxu0 0
        %392 = vmatpush1.bf16.msra.mxu0 %v375
        %393 = vmatprep.subr.bf16.mxu0 0
        %394 = vmatpush2.bf16.msra.mxu0 0
        %395 = vmatprep.subr.bf16.mxu0 0
        %396 = vmatpush2.bf16.msra.mxu0 0
        %397 = vmatprep.subr.bf16.mxu0 0
        %398 = vmatpush2.bf16.msra.mxu0 0
        %399 = vmatprep.subr.bf16.mxu0 0
        %400 = vmatpush2.bf16.msra.mxu0 0
        %401 = vmatprep.subr.bf16.mxu0 0
        %402 = vmatpush2.bf16.msra.mxu0 0
        %403 = vmatprep.subr.bf16.mxu0 0
        %404 = vmatpush2.bf16.msra.mxu0 0
        %405 = vmatprep.subr.bf16.mxu0 0
        %406 = vmatpush2.bf16.msra.mxu0 0
        %407 = vmatprep.subr.bf16.mxu0 0
        %408 = vmatpush2.bf16.msra.mxu0 0
        %409 = vmatprep.mubr.bf16.mxu0 0
        %410 = vmatmul.mubr.bf16.gmra.mxu0 %v372
        %v411 = vpop.f32.mrf.mxu0
        %v412 = vadd.f32 0.0, %v411
        %v413 = vpop.f32.mrf.mxu0
        %v414 = vpop.f32.mrf.mxu0
        %v415 = vadd.f32 0.0, %v414
        %v416 = vpop.f32.mrf.mxu0
        %417 = vdwg.mxu0
        %v418 = vadd.f32 %v356, %v412
        %v419 = vadd.f32 %v359, %v415
        %421 = vset.pattern.permute.xlu0 0
        %422 = vperm.xlu0 %421, %v243
        %v423 = vpop.permute.xlu0 %422
        %426 = vset.pattern.permute.xlu0 0
        %427 = vperm.xlu0 %426, %v244
        %v428 = vpop.permute.xlu0 %427
        %v430 = vadd.f32 %v418, %v423
        %v431 = vadd.f32 %v419, %v428
        %432 = vst [vmem:[%s212] sm:$0xff] %v430
        %433 = vst [vmem:[%s212 + $0x8] sm:$0xff] %v431
        %v434 = vlaneseq
        %v435 = vand.u32 %v434, 127
        %vm436 = vcmp.ge.s32.totalorder %v435, 0
        %vm437 = vcmp.lt.s32.totalorder %v435, 16
        %vm438 = vmand %vm436, %vm437
        %p439 = scmp.lt.s32.totalorder %s17, 2
        %s440 = scalar_select %p439, 1, 0
        %v441 = vstv %s440
        %vm442 = vcmp.eq.s32.totalorder %v441, 1
        %vm443 = vmand %vm438, %vm442
        %v444 = vsel %vm443, 1, 0
        %v445 = vcvt.s32.f32 %v444
        %v446 = vmul.f32 %v430, %v445
        %v447 = vmul.f32 %v431, %v445
        %448 = vadd.xlane.f32.xlu0 %v446
        %v449 = vpop.xlane.xlu0 %448
        %450 = vadd.xlane.f32.xlu0 %v447
        %v451 = vpop.xlane.xlu0 %450
        %vm452 = vcmask 7168
        %453 = vst.msk [vmem:[%s235] sm:$0xff] %vm452, %v449
        %454 = vst.msk [vmem:[%s235 + $0x8] sm:$0xff] %vm452, %v451
        %v455 = vmul.f32 %v446, %v430
        %v456 = vmul.f32 %v447, %v431
        %457 = vadd.xlane.f32.xlu0 %v455
        %v458 = vpop.xlane.xlu0 %457
        %459 = vadd.xlane.f32.xlu0 %v456
        %v460 = vpop.xlane.xlu0 %459
        %461 = vst.msk [vmem:[%s240] sm:$0xff] %vm452, %v458
        %462 = vst.msk [vmem:[%s240 + $0x8] sm:$0xff] %vm452, %v460
        %s463 = sand.u32 %s93, 1
        %s464 = sand.u32 %s93, 1
        %s465 = smul.addr %s464, 16
        %s466 = scalar_lea.vmem [#allocation2], %s465
        %p467 = scmp.lt.s32.totalorder %s17, 1
        %s468 = scalar_select %p467, %s17, 1
        %s469 = smul.addr %s468, 2
        %s470 = smul.addr %s469, 8
        %s471 = scalar_lea.vmem %s4, %s470
        %p472 = scmp.lt.s32.totalorder %s17, 1
        %s473 = scalar_select %p472, %s17, 1
        %s474 = smul.addr %s473, 2
        %s475 = smul.addr %s474, 8
        %s476 = scalar_lea.vmem %s5, %s475
        // Predicated region
        $region33: #{residual_block.3} parent=31 // pred_check
          %p477 = pneg %p103
        $region34: #{residual_block.3} parent=31 // pred_check_branch
          %479 = sbr.rel (%p477) target = $region36
        $region35: #{residual_block.3} parent=31 // pred_region
          %s480 = smul.addr %s17, 8
          %s481 = scalar_lea.vmem %s3, %s480
          // Predicated region
          $region37: #{residual_block.3} parent=35 // pred_check
            _
          $region38: #{residual_block.3} parent=35 // pred_check_branch
            %483 = sbr.rel (0) target = $region40
          $region39: #{residual_block.3} parent=35 // pred_region
            // Predicated region
            $region41: #{residual_block.3} parent=39 // pred_check
              _
            $region42: #{residual_block.3} parent=39 // pred_check_branch
              %485 = sbr.rel (0) target = $region44
            $region43: #{residual_block.3} parent=39 // pred_region
              // Predicated region
              $region56: #{residual_block.3} parent=43 // pred_check
                _
              $region57: #{residual_block.3} parent=43 // pred_check_branch
                %503 = sbr.rel (0) target = $region59
              $region58: #{residual_block.3} parent=43 // pred_region
                loop: start=0, step=1, limit=1
                $region60: #{residual_block.3} parent=58 // loop_pre_header
                  _
                $region61: #{residual_block.3} parent=58 // loop_header
                  %s505 = sphi 0, %s509
                  %p506 = scmp.ge.s32.totalorder %s505, 1
                  %s510 = sphi %s466, %s466
                  %s511 = sphi %s481, %s481
                $region62: #{residual_block.3} parent=58 // loop_header_branch
                  %508 = sbr.rel (%p506) target = $region66
                $region63: #{residual_block.3} parent=58 // loop_body
                  %v512 = vld [vmem:[%s510] sm:$0xff]
                  %513 = vst [vmem:[%s511] sm:$0xff] %v512
                  %v514 = vld [vmem:[%s510 + $0x8] sm:$0xff]
                  %515 = vst [vmem:[%s511 + $0x10] sm:$0xff] %v514
                $region64: #{residual_block.3} parent=58 // loop_footer
                  %s509 = sadd.s32 1, %s505
                $region65: #{residual_block.3} parent=58 // loop_footer_branch
                  %504 = sbr.rel target = $region61
                $region66: #{residual_block.3} parent=58 // loop_exit
                  _
              $region59: #{residual_block.3} parent=43 // pred_fallthru
                _
              // Predicated region
              $region67: #{residual_block.3} parent=43 // pred_check
                _
              $region68: #{residual_block.3} parent=43 // pred_check_branch
                %517 = sbr.rel target = $region70
              $region69: #{residual_block.3} parent=43 // pred_region
                _
              $region70: #{residual_block.3} parent=43 // pred_fallthru
                _
            $region44: #{residual_block.3} parent=39 // pred_fallthru
              _
            // Predicated region
            $region45: #{residual_block.3} parent=39 // pred_check
              _
            $region46: #{residual_block.3} parent=39 // pred_check_branch
              %487 = sbr.rel target = $region48
            $region47: #{residual_block.3} parent=39 // pred_region
              %s489 = ssub.s32 256, 1
              loop: start=0, step=1, limit=1
              $region49: #{residual_block.3} parent=47 // loop_pre_header
                _
              $region50: #{residual_block.3} parent=47 // loop_header
                %s491 = sphi 0, %s495
                %p492 = scmp.ge.s32.totalorder %s491, 1
                %s496 = sphi %s466, %s466
                %s497 = sphi %s481, %s481
              $region51: #{residual_block.3} parent=47 // loop_header_branch
                %494 = sbr.rel (%p492) target = $region55
              $region52: #{residual_block.3} parent=47 // loop_body
                %v498 = vld [vmem:[%s496] sm:%s489]
                %499 = vst [vmem:[%s497] sm:%s489] %v498
                %v500 = vld [vmem:[%s496 + $0x8] sm:%s489]
                %501 = vst [vmem:[%s497 + $0x10] sm:%s489] %v500
              $region53: #{residual_block.3} parent=47 // loop_footer
                %s495 = sadd.s32 1, %s491
              $region54: #{residual_block.3} parent=47 // loop_footer_branch
                %490 = sbr.rel target = $region50
              $region55: #{residual_block.3} parent=47 // loop_exit
                _
            $region48: #{residual_block.3} parent=39 // pred_fallthru
              _
          $region40: #{residual_block.3} parent=35 // pred_fallthru
            _
          %518 = vnop
        $region36: #{residual_block.3} parent=31 // pred_fallthru
          _
        // Predicated region
        $region71: #{residual_block.3} parent=31 // pred_check
          %p519 = pneg %p129
        $region72: #{residual_block.3} parent=31 // pred_check_branch
          %521 = sbr.rel (%p519) target = $region74
        $region73: #{residual_block.3} parent=31 // pred_region
          _
        $region74: #{residual_block.3} parent=31 // pred_fallthru
          _
        // Predicated region
        $region75: #{residual_block.3} parent=31 // pred_check
          %p522 = pneg %p155
        $region76: #{residual_block.3} parent=31 // pred_check_branch
          %524 = sbr.rel (%p522) target = $region78
        $region77: #{residual_block.3} parent=31 // pred_region
          _
        $region78: #{residual_block.3} parent=31 // pred_fallthru
          _
      $region32: #{residual_block.3} parent=5 // pred_fallthru
        _
      %p525 = scmp.le.s32.totalorder 2, %s12
      // Predicated region
      $region79: #{residual_block.3} parent=5 // pred_check
        %p526 = pneg %p525
      $region80: #{residual_block.3} parent=5 // pred_check_branch
        %528 = sbr.rel (%p526) target = $region82
      $region81: #{residual_block.3} parent=5 // pred_region
        %s529 = ssub.s32 %s12, 2
        // Predicated region
        $region83: #{residual_block.3} parent=81 // pred_check
          %p530 = pneg %p109
        $region84: #{residual_block.3} parent=81 // pred_check_branch
          %532 = sbr.rel (%p530) target = $region86
        $region85: #{residual_block.3} parent=81 // pred_region
          %s533 = sand.u32 %s94, 1
          %s534 = sand.u32 %s94, 1
          %s535 = smul.addr %s534, 16
          %s536 = scalar_lea.vmem [#allocation2], %s535
        $region86: #{residual_block.3} parent=81 // pred_fallthru
          _
        // Predicated region
        $region87: #{residual_block.3} parent=81 // pred_check
          %p537 = pneg %p135
        $region88: #{residual_block.3} parent=81 // pred_check_branch
          %539 = sbr.rel (%p537) target = $region90
        $region89: #{residual_block.3} parent=81 // pred_region
          %p540 = scmp.lt.s32.totalorder %s18, 1
          %s541 = scalar_select %p540, %s18, 1
          %s542 = smul.addr %s541, 2
          %s543 = smul.addr %s542, 8
          %s544 = scalar_lea.vmem %s4, %s543
        $region90: #{residual_block.3} parent=81 // pred_fallthru
          _
        // Predicated region
        $region91: #{residual_block.3} parent=81 // pred_check
          %p545 = pneg %p161
        $region92: #{residual_block.3} parent=81 // pred_check_branch
          %547 = sbr.rel (%p545) target = $region94
        $region93: #{residual_block.3} parent=81 // pred_region
          %p548 = scmp.lt.s32.totalorder %s18, 1
          %s549 = scalar_select %p548, %s18, 1
          %s550 = smul.addr %s549, 2
          %s551 = smul.addr %s550, 8
          %s552 = scalar_lea.vmem %s5, %s551
        $region94: #{residual_block.3} parent=81 // pred_fallthru
          _
      $region82: #{residual_block.3} parent=5 // pred_fallthru
        _
    $region6: #{residual_block.3} parent=1 // loop_footer
      %s16 = sadd.s32 1, %s12
    $region7: #{residual_block.3} parent=1 // loop_footer_branch
      %11 = sbr.rel target = $region3
    $region8: #{residual_block.3} parent=1 // loop_exit
      _

// kernel: residual_block.4
$region0: #{residual_block.4}
  #allocation0 [shape = 'u32[]', space=smem, size = 0x4, offset = 0x4, fixed_abs, tag = 'smem constant byte address 0x4 - core index']
  #allocation1 [shape = 'u32[144,128]{1,0:T(1,128)}', space=vmem, size = 0x12000, scoped, tag = 'internal scratch']
  %s0 = inlined_call_operand.vmem [shape: f32[16,256], index: 0, kind: input, shape index: {}]
  %s1 = inlined_call_operand.vmem [shape: f32[16,1], index: 1, kind: input, shape index: {}]
  %s2 = inlined_call_operand.vmem [shape: f32[16,1], index: 2, kind: input, shape index: {}]
  %s3 = inlined_call_operand.vmem [shape: bf16[3,16,16], index: 3, kind: input, shape index: {}]
  %s4 = inlined_call_operand.vmem [shape: f32[16,1], index: 4, kind: input, shape index: {}]
  %s5 = inlined_call_operand.vmem [shape: f32[16,256], index: 5, kind: output, shape index: {0}]
  %s6 = inlined_call_operand.vmem [shape: f32[2,16,1], index: 6, kind: output, shape index: {1}]
  %s7 = inlined_call_operand.vmem [shape: f32[2,16,1], index: 7, kind: output, shape index: {2}]
  %8 = xla_tuple %s5, %s6, %s7
  %s9 = sld [smem:[#allocation0]]
  $region141: #{residual_block.4} parent=0
    _
  %s11 = ssub.s32 1, %s9
  %s12 = scalar_select 0, %s11, %s9
  $region1: #{residual_block.4} parent=0
    #allocation2 [shape = 'u8[16384]{0}', space=vmem, size = 0x4000, scoped, tag = 'input window, operand 0']
    #allocation3 [shape = 'u8[16384]{0}', space=vmem, size = 0x4000, scoped, tag = 'output window, operand 0']
    loop: start=0, step=1, limit=4
    $region2: #{residual_block.4} parent=1 // loop_pre_header
      _
    $region3: #{residual_block.4} parent=1 // loop_header
      %s14 = sphi 0, %s18
      %p15 = scmp.ge.s32.totalorder %s14, 4
      %s24 = sphi 0, %s26
      %s27 = sphi 0, %s24
      %s28 = sphi 0, %s27
      %s44 = sphi 0, %s28
      %s48 = sphi 0, %s48
      %s50 = sphi 0, %s48
      %s51 = sphi 0, %s50
      %s65 = sphi 0, %s51
      %s69 = sphi 0, %s69
      %s71 = sphi 0, %s69
      %s72 = sphi 0, %s71
      %s86 = sphi 0, %s72
      %s90 = sphi 0, %s90
      %s92 = sphi 0, %s90
      %s93 = sphi 0, %s92
      %s107 = sphi 0, %s93
      %s111 = sphi 0, %s111
      %s113 = sphi 0, %s111
      %s114 = sphi 0, %s113
      %s128 = sphi 0, %s114
      %s134 = sphi 0, %s136
      %s137 = sphi 0, %s134
      %s138 = sphi 0, %s137
      %s154 = sphi 0, %s138
      %s160 = sphi 0, %s162
      %s163 = sphi 0, %s160
      %s164 = sphi 0, %s163
      %s180 = sphi 0, %s164
      %s186 = sphi 0, %s188
      %s189 = sphi 0, %s186
      %s190 = sphi 0, %s189
      %s206 = sphi 0, %s190
    $region4: #{residual_block.4} parent=1 // loop_header_branch
      %17 = sbr.rel (%p15) target = $region8
    $region5: #{residual_block.4} parent=1 // loop_body
      %s19 = ssub.s32 %s14, 1
      %s20 = ssub.s32 %s14, 2
      %s21 = sadd.s32 %s14, 1
      %s22 = ssub.s32 %s14, %s21
      %p23 = scmp.eq.s32.totalorder %s22, 0
      %s25 = sadd.s32 %s24, 1
      %s26 = scalar_select %p23, %s24, %s25
      %p29 = pneg %p23
      %p30 = scmp.eq.s32.totalorder %s14, 1
      %p31 = por %p29, %p30
      %p32 = scmp.ne.s32.totalorder %s24, %s27
      %p33 = scmp.eq.s32.totalorder %s14, 0
      %p34 = por %p32, %p33
      %p35 = scmp.ne.s32.totalorder %s24, %s27
      %p36 = scmp.eq.s32.totalorder %s19, 1
      %p37 = por %p35, %p36
      %p38 = scmp.ne.s32.totalorder %s27, %s28
      %p39 = scmp.eq.s32.totalorder %s19, 0
      %p40 = por %p38, %p39
      %p41 = scmp.ne.s32.totalorder %s27, %s28
      %p42 = scmp.eq.s32.totalorder %s20, 1
      %p43 = por %p41, %p42
      %p45 = scmp.ne.s32.totalorder %s28, %s44
      %p46 = scmp.eq.s32.totalorder %s20, 0
      %p47 = por %p45, %p46
      %s49 = sadd.s32 %s48, 1
      %p52 = scmp.eq.s32.totalorder %s14, 1
      %p53 = scmp.ne.s32.totalorder %s48, %s50
      %p54 = scmp.eq.s32.totalorder %s14, 0
      %p55 = por %p53, %p54
      %p56 = scmp.ne.s32.totalorder %s48, %s50
      %p57 = scmp.eq.s32.totalorder %s19, 1
      %p58 = por %p56, %p57
      %p59 = scmp.ne.s32.totalorder %s50, %s51
      %p60 = scmp.eq.s32.totalorder %s19, 0
      %p61 = por %p59, %p60
      %p62 = scmp.ne.s32.totalorder %s50, %s51
      %p63 = scmp.eq.s32.totalorder %s20, 1
      %p64 = por %p62, %p63
      %p66 = scmp.ne.s32.totalorder %s51, %s65
      %p67 = scmp.eq.s32.totalorder %s20, 0
      %p68 = por %p66, %p67
      %s70 = sadd.s32 %s69, 1
      %p73 = scmp.eq.s32.totalorder %s14, 1
      %p74 = scmp.ne.s32.totalorder %s69, %s71
      %p75 = scmp.eq.s32.totalorder %s14, 0
      %p76 = por %p74, %p75
      %p77 = scmp.ne.s32.totalorder %s69, %s71
      %p78 = scmp.eq.s32.totalorder %s19, 1
      %p79 = por %p77, %p78
      %p80 = scmp.ne.s32.totalorder %s71, %s72
      %p81 = scmp.eq.s32.totalorder %s19, 0
      %p82 = por %p80, %p81
      %p83 = scmp.ne.s32.totalorder %s71, %s72
      %p84 = scmp.eq.s32.totalorder %s20, 1
      %p85 = por %p83, %p84
      %p87 = scmp.ne.s32.totalorder %s72, %s86
      %p88 = scmp.eq.s32.totalorder %s20, 0
      %p89 = por %p87, %p88
      %s91 = sadd.s32 %s90, 1
      %p94 = scmp.eq.s32.totalorder %s14, 1
      %p95 = scmp.ne.s32.totalorder %s90, %s92
      %p96 = scmp.eq.s32.totalorder %s14, 0
      %p97 = por %p95, %p96
      %p98 = scmp.ne.s32.totalorder %s90, %s92
      %p99 = scmp.eq.s32.totalorder %s19, 1
      %p100 = por %p98, %p99
      %p101 = scmp.ne.s32.totalorder %s92, %s93
      %p102 = scmp.eq.s32.totalorder %s19, 0
      %p103 = por %p101, %p102
      %p104 = scmp.ne.s32.totalorder %s92, %s93
      %p105 = scmp.eq.s32.totalorder %s20, 1
      %p106 = por %p104, %p105
      %p108 = scmp.ne.s32.totalorder %s93, %s107
      %p109 = scmp.eq.s32.totalorder %s20, 0
      %p110 = por %p108, %p109
      %s112 = sadd.s32 %s111, 1
      %p115 = scmp.eq.s32.totalorder %s14, 1
      %p116 = scmp.ne.s32.totalorder %s111, %s113
      %p117 = scmp.eq.s32.totalorder %s14, 0
      %p118 = por %p116, %p117
      %p119 = scmp.ne.s32.totalorder %s111, %s113
      %p120 = scmp.eq.s32.totalorder %s19, 1
      %p121 = por %p119, %p120
      %p122 = scmp.ne.s32.totalorder %s113, %s114
      %p123 = scmp.eq.s32.totalorder %s19, 0
      %p124 = por %p122, %p123
      %p125 = scmp.ne.s32.totalorder %s113, %s114
      %p126 = scmp.eq.s32.totalorder %s20, 1
      %p127 = por %p125, %p126
      %p129 = scmp.ne.s32.totalorder %s114, %s128
      %p130 = scmp.eq.s32.totalorder %s20, 0
      %p131 = por %p129, %p130
      %s132 = ssub.s32 %s14, %s21
      %p133 = scmp.eq.s32.totalorder %s132, 0
      %s135 = sadd.s32 %s134, 1
      %s136 = scalar_select %p133, %s134, %s135
      %p139 = pneg %p133
      %p140 = scmp.eq.s32.totalorder %s14, 1
      %p141 = por %p139, %p140
      %p142 = scmp.ne.s32.totalorder %s134, %s137
      %p143 = scmp.eq.s32.totalorder %s14, 0
      %p144 = por %p142, %p143
      %p145 = scmp.ne.s32.totalorder %s134, %s137
      %p146 = scmp.eq.s32.totalorder %s19, 1
      %p147 = por %p145, %p146
      %p148 = scmp.ne.s32.totalorder %s137, %s138
      %p149 = scmp.eq.s32.totalorder %s19, 0
      %p150 = por %p148, %p149
      %p151 = scmp.ne.s32.totalorder %s137, %s138
      %p152 = scmp.eq.s32.totalorder %s20, 1
      %p153 = por %p151, %p152
      %p155 = scmp.ne.s32.totalorder %s138, %s154
      %p156 = scmp.eq.s32.totalorder %s20, 0
      %p157 = por %p155, %p156
      %s158 = ssub.s32 %s14, %s21
      %p159 = scmp.eq.s32.totalorder %s158, 0
      %s161 = sadd.s32 %s160, 1
      %s162 = scalar_select %p159, %s160, %s161
      %p165 = pneg %p159
      %p166 = scmp.eq.s32.totalorder %s14, 1
      %p167 = por %p165, %p166
      %p168 = scmp.ne.s32.totalorder %s160, %s163
      %p169 = scmp.eq.s32.totalorder %s14, 0
      %p170 = por %p168, %p169
      %p171 = scmp.ne.s32.totalorder %s160, %s163
      %p172 = scmp.eq.s32.totalorder %s19, 1
      %p173 = por %p171, %p172
      %p174 = scmp.ne.s32.totalorder %s163, %s164
      %p175 = scmp.eq.s32.totalorder %s19, 0
      %p176 = por %p174, %p175
      %p177 = scmp.ne.s32.totalorder %s163, %s164
      %p178 = scmp.eq.s32.totalorder %s20, 1
      %p179 = por %p177, %p178
      %p181 = scmp.ne.s32.totalorder %s164, %s180
      %p182 = scmp.eq.s32.totalorder %s20, 0
      %p183 = por %p181, %p182
      %s184 = ssub.s32 %s14, %s21
      %p185 = scmp.eq.s32.totalorder %s184, 0
      %s187 = sadd.s32 %s186, 1
      %s188 = scalar_select %p185, %s186, %s187
      %p191 = pneg %p185
      %p192 = scmp.eq.s32.totalorder %s14, 1
      %p193 = por %p191, %p192
      %p194 = scmp.ne.s32.totalorder %s186, %s189
      %p195 = scmp.eq.s32.totalorder %s14, 0
      %p196 = por %p194, %p195
      %p197 = scmp.ne.s32.totalorder %s186, %s189
      %p198 = scmp.eq.s32.totalorder %s19, 1
      %p199 = por %p197, %p198
      %p200 = scmp.ne.s32.totalorder %s189, %s190
      %p201 = scmp.eq.s32.totalorder %s19, 0
      %p202 = por %p200, %p201
      %p203 = scmp.ne.s32.totalorder %s189, %s190
      %p204 = scmp.eq.s32.totalorder %s20, 1
      %p205 = por %p203, %p204
      %p207 = scmp.ne.s32.totalorder %s190, %s206
      %p208 = scmp.eq.s32.totalorder %s20, 0
      %p209 = por %p207, %p208
      %p210 = scmp.le.s32.totalorder 1, %s14
      %p211 = scmp.lt.s32.totalorder %s14, 3
      %p212 = pnand %p210, %p211
      %p213 = pneg %p212
      // Predicated region
      $region9: #{residual_block.4} parent=5 // pred_check
        _
      $region10: #{residual_block.4} parent=5 // pred_check_branch
        %215 = sbr.rel (%p212) target = $region12
      $region11: #{residual_block.4} parent=5 // pred_region
        %s216 = ssub.s32 %s14, 1
        // Predicated region
        $region13: #{residual_block.4} parent=11 // pred_check
          %p217 = pneg %p61
        $region14: #{residual_block.4} parent=11 // pred_check_branch
          %219 = sbr.rel (%p217) target = $region16
        $region15: #{residual_block.4} parent=11 // pred_region
          _
        $region16: #{residual_block.4} parent=11 // pred_fallthru
          _
        // Predicated region
        $region17: #{residual_block.4} parent=11 // pred_check
          %p220 = pneg %p82
        $region18: #{residual_block.4} parent=11 // pred_check_branch
          %222 = sbr.rel (%p220) target = $region20
        $region19: #{residual_block.4} parent=11 // pred_region
          _
        $region20: #{residual_block.4} parent=11 // pred_fallthru
          _
        // Predicated region
        $region21: #{residual_block.4} parent=11 // pred_check
          %p223 = pneg %p103
        $region22: #{residual_block.4} parent=11 // pred_check_branch
          %225 = sbr.rel (%p223) target = $region24
        $region23: #{residual_block.4} parent=11 // pred_region
          _
        $region24: #{residual_block.4} parent=11 // pred_fallthru
          _
        // Predicated region
        $region25: #{residual_block.4} parent=11 // pred_check
          %p226 = pneg %p124
        $region26: #{residual_block.4} parent=11 // pred_check_branch
          %228 = sbr.rel (%p226) target = $region28
        $region27: #{residual_block.4} parent=11 // pred_region
          _
        $region28: #{residual_block.4} parent=11 // pred_fallthru
          _
      $region12: #{residual_block.4} parent=5 // pred_fallthru
        _
      %p229 = scmp.lt.s32.totalorder %s14, 2
      // Predicated region
      $region29: #{residual_block.4} parent=5 // pred_check
        %p230 = pneg %p229
      $region30: #{residual_block.4} parent=5 // pred_check_branch
        %232 = sbr.rel (%p230) target = $region32
      $region31: #{residual_block.4} parent=5 // pred_region
        // Predicated region
        $region33: #{residual_block.4} parent=31 // pred_check
          %p233 = pneg %p34
        $region34: #{residual_block.4} parent=31 // pred_check_branch
          %235 = sbr.rel (%p233) target = $region36
        $region35: #{residual_block.4} parent=31 // pred_region
          %s236 = sand.u32 %s24, 1
          %s237 = sand.u32 %s24, 1
          %s238 = smul.addr %s237, 16
          %s239 = scalar_lea.vmem [#allocation2], %s238
          %s240 = smul.addr %s14, 8
          %s241 = scalar_lea.vmem %s0, %s240
          // Predicated region
          $region37: #{residual_block.4} parent=35 // pred_check
            _
          $region38: #{residual_block.4} parent=35 // pred_check_branch
            %243 = sbr.rel (0) target = $region40
          $region39: #{residual_block.4} parent=35 // pred_region
            // Predicated region
            $region41: #{residual_block.4} parent=39 // pred_check
              _
            $region42: #{residual_block.4} parent=39 // pred_check_branch
              %245 = sbr.rel (0) target = $region44
            $region43: #{residual_block.4} parent=39 // pred_region
              // Predicated region
              $region56: #{residual_block.4} parent=43 // pred_check
                _
              $region57: #{residual_block.4} parent=43 // pred_check_branch
                %263 = sbr.rel (0) target = $region59
              $region58: #{residual_block.4} parent=43 // pred_region
                loop: start=0, step=1, limit=1
                $region60: #{residual_block.4} parent=58 // loop_pre_header
                  _
                $region61: #{residual_block.4} parent=58 // loop_header
                  %s265 = sphi 0, %s269
                  %p266 = scmp.ge.s32.totalorder %s265, 1
                  %s270 = sphi %s241, %s241
                  %s271 = sphi %s239, %s239
                $region62: #{residual_block.4} parent=58 // loop_header_branch
                  %268 = sbr.rel (%p266) target = $region66
                $region63: #{residual_block.4} parent=58 // loop_body
                  %v272 = vld [vmem:[%s270] sm:$0xff]
                  %273 = vst [vmem:[%s271] sm:$0xff] %v272
                  %v274 = vld [vmem:[%s270 + $0x10] sm:$0xff]
                  %275 = vst [vmem:[%s271 + $0x8] sm:$0xff] %v274
                $region64: #{residual_block.4} parent=58 // loop_footer
                  %s269 = sadd.s32 1, %s265
                $region65: #{residual_block.4} parent=58 // loop_footer_branch
                  %264 = sbr.rel target = $region61
                $region66: #{residual_block.4} parent=58 // loop_exit
                  _
              $region59: #{residual_block.4} parent=43 // pred_fallthru
                _
              // Predicated region
              $region67: #{residual_block.4} parent=43 // pred_check
                _
              $region68: #{residual_block.4} parent=43 // pred_check_branch
                %277 = sbr.rel target = $region70
              $region69: #{residual_block.4} parent=43 // pred_region
                _
              $region70: #{residual_block.4} parent=43 // pred_fallthru
                _
            $region44: #{residual_block.4} parent=39 // pred_fallthru
              _
            // Predicated region
            $region45: #{residual_block.4} parent=39 // pred_check
              _
            $region46: #{residual_block.4} parent=39 // pred_check_branch
              %247 = sbr.rel target = $region48
            $region47: #{residual_block.4} parent=39 // pred_region
              %s249 = ssub.s32 256, 1
              loop: start=0, step=1, limit=1
              $region49: #{residual_block.4} parent=47 // loop_pre_header
                _
              $region50: #{residual_block.4} parent=47 // loop_header
                %s251 = sphi 0, %s255
                %p252 = scmp.ge.s32.totalorder %s251, 1
                %s256 = sphi %s241, %s241
                %s257 = sphi %s239, %s239
              $region51: #{residual_block.4} parent=47 // loop_header_branch
                %254 = sbr.rel (%p252) target = $region55
              $region52: #{residual_block.4} parent=47 // loop_body
                %v258 = vld [vmem:[%s256] sm:%s249]
                %259 = vst [vmem:[%s257] sm:%s249] %v258
                %v260 = vld [vmem:[%s256 + $0x10] sm:%s249]
                %261 = vst [vmem:[%s257 + $0x8] sm:%s249] %v260
              $region53: #{residual_block.4} parent=47 // loop_footer
                %s255 = sadd.s32 1, %s251
              $region54: #{residual_block.4} parent=47 // loop_footer_branch
                %250 = sbr.rel target = $region50
              $region55: #{residual_block.4} parent=47 // loop_exit
                _
            $region48: #{residual_block.4} parent=39 // pred_fallthru
              _
          $region40: #{residual_block.4} parent=35 // pred_fallthru
            _
          %278 = vnop
        $region36: #{residual_block.4} parent=31 // pred_fallthru
          _
      $region32: #{residual_block.4} parent=5 // pred_fallthru
        _
      %p279 = scmp.le.s32.totalorder 1, %s14
      %p280 = scmp.lt.s32.totalorder %s14, 3
      %p281 = pnand %p279, %p280
      %p282 = pneg %p281
      // Predicated region
      $region71: #{residual_block.4} parent=5 // pred_check
        _
      $region72: #{residual_block.4} parent=5 // pred_check_branch
        %284 = sbr.rel (%p281) target = $region74
      $region73: #{residual_block.4} parent=5 // pred_region
        %s285 = ssub.s32 %s14, 1
        %s286 = sand.u32 %s27, 1
        %s287 = sand.u32 %s27, 1
        %s288 = smul.addr %s287, 16
        %s289 = scalar_lea.vmem [#allocation2], %s288
        // Predicated region
        $region75: #{residual_block.4} parent=73 // pred_check
          %p290 = pneg %p40
        $region76: #{residual_block.4} parent=73 // pred_check_branch
          %292 = sbr.rel (%p290) target = $region78
        $region77: #{residual_block.4} parent=73 // pred_region
          _
        $region78: #{residual_block.4} parent=73 // pred_fallthru
          _
        %s293 = sand.u32 %s27, 1
        %s294 = sand.u32 %s27, 1
        %s295 = smul.addr %s294, 16
        %s296 = scalar_lea.vmem [#allocation2], %s295
        %p297 = pneg %p40
        %p298 = pneg %p37
        %p299 = pneg %p61
        %p300 = pneg %p58
        %p301 = pneg %p82
        %p302 = pneg %p79
        %p303 = pneg %p103
        %p304 = pneg %p100
        %p305 = pneg %p124
        %p306 = pneg %p121
        %p307 = pneg %p150
        %p308 = pneg %p147
        %s309 = sand.u32 %s137, 1
        %s310 = sand.u32 %s137, 1
        %s311 = smul.addr %s310, 16
        %s312 = scalar_lea.vmem [#allocation3], %s311
        %p313 = pneg %p176
        %p314 = pneg %p173
        %p315 = scmp.lt.s32.totalorder %s19, 1
        %s316 = scalar_select %p315, %s19, 1
        %s317 = smul.addr %s316, 2
        %s318 = smul.addr %s317, 8
        %s319 = scalar_lea.vmem %s6, %s318
        %p320 = pneg %p202
        %p321 = pneg %p199
        %p322 = scmp.lt.s32.totalorder %s19, 1
        %s323 = scalar_select %p322, %s19, 1
        %s324 = smul.addr %s323, 2
        %s325 = smul.addr %s324, 8
        %s326 = scalar_lea.vmem %s7, %s325
        %p327 = scmp.lt.s32.totalorder %s19, 1
        %s328 = scalar_select %p327, %s19, 1
        %s329 = smul.addr %s328, 2
        %s330 = smul.addr %s329, 8
        %s331 = scalar_lea.vmem %s6, %s330
        %p332 = scmp.lt.s32.totalorder %s19, 1
        %s333 = scalar_select %p332, %s19, 1
        %s334 = smul.addr %s333, 2
        %s335 = smul.addr %s334, 8
        %s336 = scalar_lea.vmem %s7, %s335
        %v338 = vlaneseq
        %v339 = vand.u32 %v338, 127
        %vm340 = vcmp.ge.s32.totalorder %v339, 0
        %vm341 = vcmp.lt.s32.totalorder %v339, 16
        %vm342 = vmand %vm340, %vm341
        %p343 = scmp.lt.s32.totalorder %s19, 2
        %s344 = scalar_select %p343, 1, 0
        %v345 = vstv %s344
        %vm346 = vcmp.eq.s32.totalorder %v345, 1
        %vm347 = vmand %vm342, %vm346
        %v348 = vsel %vm347, 1, 0
        %v349 = vcvt.s32.f32 %v348
        %v350 = vld [vmem:[%s289] sm:$0xff]
        %v351 = vld [vmem:[%s289 + $0x8] sm:$0xff]
        %v352 = vld [vmem:[%s1] sm:$0xff]
        %v353 = vld [vmem:[%s1 + $0x8] sm:$0xff]
        %355 = vset.pattern.permute.xlu0 0
        %356 = vperm.xlu0 %355, %v352
        %v357 = vpop.permute.xlu0 %356
        %360 = vset.pattern.permute.xlu0 0
        %361 = vperm.xlu0 %360, %v353
        %v362 = vpop.permute.xlu0 %361
        %v364 = vmul.f32 %v350, %v357
        %v365 = vmul.f32 %v351, %v362
        %v366 = vld [vmem:[%s2] sm:$0xff]
        %v367 = vld [vmem:[%s2 + $0x8] sm:$0xff]
        %369 = vset.pattern.permute.xlu0 0
        %370 = vperm.xlu0 %369, %v366
        %v371 = vpop.permute.xlu0 %370
        %374 = vset.pattern.permute.xlu0 0
        %375 = vperm.xlu0 %374, %v367
        %v376 = vpop.permute.xlu0 %375
        %v378 = vadd.f32 %v364, %v371
        %v379 = vadd.f32 %v365, %v376
        %v380 = vmax.f32 %v378, 0.0
        %v381 = vmax.f32 %v379, 0.0
        %v382 = vmul.f32 %v380, %v349
        %v383 = vmul.f32 %v381, %v349
        %v384 = vld [vmem:[%s4] sm:$0xff]
        %v385 = vld [vmem:[%s4 + $0x8] sm:$0xff]
        %386 = vrot.lane.b32.xlu0 %v382, 1
        %v387 = vpop.permute.xlu0 %386
        %388 = vrot.lane.b32.xlu0 %v383, 1
        %v389 = vpop.permute.xlu0 %388
        %390 = vrot.lane.b32.xlu0 %v382, 127
        %v391 = vpop.permute.xlu0 %390
        %392 = vrot.lane.b32.xlu0 %v383, 127
        %v393 = vpop.permute.xlu0 %392
        %v394 = vld [vmem:[%s3] sm:$0xf]
        %v395 = vld [vmem:[%s3 + $0x4] sm:$0xf]
        %v396 = vpack.c.bf16 %v389, %v387
        %s397 = scalar_lea.vmem %s3, 8
        %v398 = vld [vmem:[%s397] sm:$0xf]
        %v399 = vld [vmem:[%s397 + $0x4] sm:$0xf]
        %v400 = vpack.c.bf16 %v383, %v382
        %v403 = vunpack.c.l.b16 %v398
        %v404 = vunpack.c.l.b16 %v399
        %v405 = vpack.c.b16 %v404, %v403
        %vm406 = vcmask 130048
        %v408 = vsel %vm406, %v405, 0
        %410 = vmatprep.subr.bf16.mxu0 0
        %411 = vmatpush1.bf16.msra.mxu0 0
        %412 = vmatprep.subr.bf16.mxu0 0
        %413 = vmatpush1.bf16.msra.mxu0 0
        %414 = vmatprep.subr.bf16.mxu0 0
        %415 = vmatpush1.bf16.msra.mxu0 0
        %416 = vmatprep.subr.bf16.mxu0 0
        %417 = vmatpush1.bf16.msra.mxu0 0
        %418 = vmatprep.subr.bf16.mxu0 0
        %419 = vmatpush1.bf16.msra.mxu0 0
        %420 = vmatprep.subr.bf16.mxu0 0
        %421 = vmatpush1.bf16.msra.mxu0 0
        %422 = vmatprep.subr.bf16.mxu0 0
        %423 = vmatpush1.bf16.msra.mxu0 0
        %424 = vmatprep.subr.bf16.mxu0 0
        %425 = vmatpush1.bf16.msra.mxu0 %v400
        %426 = vmatprep.subr.bf16.mxu0 0
        %427 = vmatpush2.bf16.msra.mxu0 0
        %428 = vmatprep.subr.bf16.mxu0 0
        %429 = vmatpush2.bf16.msra.mxu0 0
        %430 = vmatprep.subr.bf16.mxu0 0
        %431 = vmatpush2.bf16.msra.mxu0 0
        %432 = vmatprep.subr.bf16.mxu0 0
        %433 = vmatpush2.bf16.msra.mxu0 0
        %434 = vmatprep.subr.bf16.mxu0 0
        %435 = vmatpush2.bf16.msra.mxu0 0
        %436 = vmatprep.subr.bf16.mxu0 0
        %437 = vmatpush2.bf16.msra.mxu0 0
        %438 = vmatprep.subr.bf16.mxu0 0
        %439 = vmatpush2.bf16.msra.mxu0 0
        %440 = vmatprep.subr.bf16.mxu0 0
        %441 = vmatpush2.bf16.msra.mxu0 0
        %442 = vmatprep.mubr.bf16.mxu0 0
        %443 = vmatmul.mubr.bf16.gmra.mxu0 %v408
        %v444 = vpop.f32.mrf.mxu0
        %v445 = vadd.f32 0.0, %v444
        %v446 = vpop.f32.mrf.mxu0
        %v447 = vpop.f32.mrf.mxu0
        %v448 = vadd.f32 0.0, %v447
        %v449 = vpop.f32.mrf.mxu0
        %450 = vdwg.mxu0
        %v453 = vunpack.c.l.b16 %v394
        %v454 = vunpack.c.l.b16 %v395
        %v455 = vpack.c.b16 %v454, %v453
        %v457 = vsel %vm406, %v455, 0
        %459 = vmatprep.subr.bf16.mxu0 0
        %460 = vmatpush1.bf16.msra.mxu0 0
        %461 = vmatprep.subr.bf16.mxu0 0
        %462 = vmatpush1.bf16.msra.mxu0 0
        %463 = vmatprep.subr.bf16.mxu0 0
        %464 = vmatpush1.bf16.msra.mxu0 0
        %465 = vmatprep.subr.bf16.mxu0 0
        %466 = vmatpush1.bf16.msra.mxu0 0
        %467 = vmatprep.subr.bf16.mxu0 0
        %468 = vmatpush1.bf16.msra.mxu0 0
        %469 = vmatprep.subr.bf16.mxu0 0
        %470 = vmatpush1.bf16.msra.mxu0 0
        %471 = vmatprep.subr.bf16.mxu0 0
        %472 = vmatpush1.bf16.msra.mxu0 0
        %473 = vmatprep.subr.bf16.mxu0 0
        %474 = vmatpush1.bf16.msra.mxu0 %v396
        %475 = vmatprep.subr.bf16.mxu0 0
        %476 = vmatpush2.bf16.msra.mxu0 0
        %477 = vmatprep.subr.bf16.mxu0 0
        %478 = vmatpush2.bf16.msra.mxu0 0
        %479 = vmatprep.subr.bf16.mxu0 0
        %480 = vmatpush2.bf16.msra.mxu0 0
        %481 = vmatprep.subr.bf16.mxu0 0
        %482 = vmatpush2.bf16.msra.mxu0 0
        %483 = vmatprep.subr.bf16.mxu0 0
        %484 = vmatpush2.bf16.msra.mxu0 0
        %485 = vmatprep.subr.bf16.mxu0 0
        %486 = vmatpush2.bf16.msra.mxu0 0
        %487 = vmatprep.subr.bf16.mxu0 0
        %488 = vmatpush2.bf16.msra.mxu0 0
        %489 = vmatprep.subr.bf16.mxu0 0
        %490 = vmatpush2.bf16.msra.mxu0 0
        %491 = vmatprep.mubr.bf16.mxu0 0
        %492 = vmatmul.mubr.bf16.gmra.mxu0 %v457
        %v493 = vpop.f32.mrf.mxu0
        %v494 = vadd.f32 %v445, %v493
        %v495 = vpop.f32.mrf.mxu0
        %v496 = vpop.f32.mrf.mxu0
        %v497 = vadd.f32 %v448, %v496
        %v498 = vpop.f32.mrf.mxu0
        %499 = vdwg.mxu0
        %s500 = scalar_lea.vmem %s3, 16
        %v501 = vld [vmem:[%s500] sm:$0xf]
        %v502 = vld [vmem:[%s500 + $0x4] sm:$0xf]
        %v503 = vpack.c.bf16 %v393, %v391
        %v506 = vunpack.c.l.b16 %v501
        %v507 = vunpack.c.l.b16 %v502
        %v508 = vpack.c.b16 %v507, %v506
        %v510 = vsel %vm406, %v508, 0
        %512 = vmatprep.subr.bf16.mxu0 0
        %513 = vmatpush1.bf16.msra.mxu0 0
        %514 = vmatprep.subr.bf16.mxu0 0
        %515 = vmatpush1.bf16.msra.mxu0 0
        %516 = vmatprep.subr.bf16.mxu0 0
        %517 = vmatpush1.bf16.msra.mxu0 0
        %518 = vmatprep.subr.bf16.mxu0 0
        %519 = vmatpush1.bf16.msra.mxu0 0
        %520 = vmatprep.subr.bf16.mxu0 0
        %521 = vmatpush1.bf16.msra.mxu0 0
        %522 = vmatprep.subr.bf16.mxu0 0
        %523 = vmatpush1.bf16.msra.mxu0 0
        %524 = vmatprep.subr.bf16.mxu0 0
        %525 = vmatpush1.bf16.msra.mxu0 0
        %526 = vmatprep.subr.bf16.mxu0 0
        %527 = vmatpush1.bf16.msra.mxu0 %v503
        %528 = vmatprep.subr.bf16.mxu0 0
        %529 = vmatpush2.bf16.msra.mxu0 0
        %530 = vmatprep.subr.bf16.mxu0 0
        %531 = vmatpush2.bf16.msra.mxu0 0
        %532 = vmatprep.subr.bf16.mxu0 0
        %533 = vmatpush2.bf16.msra.mxu0 0
        %534 = vmatprep.subr.bf16.mxu0 0
        %535 = vmatpush2.bf16.msra.mxu0 0
        %536 = vmatprep.subr.bf16.mxu0 0
        %537 = vmatpush2.bf16.msra.mxu0 0
        %538 = vmatprep.subr.bf16.mxu0 0
        %539 = vmatpush2.bf16.msra.mxu0 0
        %540 = vmatprep.subr.bf16.mxu0 0
        %541 = vmatpush2.bf16.msra.mxu0 0
        %542 = vmatprep.subr.bf16.mxu0 0
        %543 = vmatpush2.bf16.msra.mxu0 0
        %544 = vmatprep.mubr.bf16.mxu0 0
        %545 = vmatmul.mubr.bf16.gmra.mxu0 %v510
        %v546 = vpop.f32.mrf.mxu0
        %v547 = vadd.f32 0.0, %v546
        %v548 = vpop.f32.mrf.mxu0
        %v549 = vpop.f32.mrf.mxu0
        %v550 = vadd.f32 0.0, %v549
        %v551 = vpop.f32.mrf.mxu0
        %552 = vdwg.mxu0
        %v553 = vadd.f32 %v494, %v547
        %v554 = vadd.f32 %v497, %v550
        %556 = vset.pattern.permute.xlu0 0
        %557 = vperm.xlu0 %556, %v384
        %v558 = vpop.permute.xlu0 %557
        %561 = vset.pattern.permute.xlu0 0
        %562 = vperm.xlu0 %561, %v385
        %v563 = vpop.permute.xlu0 %562
        %v565 = vadd.f32 %v553, %v558
        %v566 = vadd.f32 %v554, %v563
        %567 = vst [vmem:[%s312] sm:$0xff] %v565
        %568 = vst [vmem:[%s312 + $0x8] sm:$0xff] %v566
        %v569 = vmul.f32 %v565, %v349
        %v570 = vmul.f32 %v566, %v349
        %571 = vadd.xlane.f32.xlu0 %v569
        %v572 = vpop.xlane.xlu0 %571
        %573 = vadd.xlane.f32.xlu0 %v570
        %v574 = vpop.xlane.xlu0 %573
        %vm575 = vcmask 7168
        %576 = vst.msk [vmem:[%s331] sm:$0xff] %vm575, %v572
        %577 = vst.msk [vmem:[%s331 + $0x8] sm:$0xff] %vm575, %v574
        %v578 = vmul.f32 %v569, %v565
        %v579 = vmul.f32 %v570, %v566
        %580 = vadd.xlane.f32.xlu0 %v578
        %v581 = vpop.xlane.xlu0 %580
        %582 = vadd.xlane.f32.xlu0 %v579
        %v583 = vpop.xlane.xlu0 %582
        %584 = vst.msk [vmem:[%s336] sm:$0xff] %vm575, %v581
        %585 = vst.msk [vmem:[%s336 + $0x8] sm:$0xff] %vm575, %v583
        %s586 = sand.u32 %s137, 1
        %s587 = sand.u32 %s137, 1
        %s588 = smul.addr %s587, 16
        %s589 = scalar_lea.vmem [#allocation3], %s588
        %p590 = scmp.lt.s32.totalorder %s19, 1
        %s591 = scalar_select %p590, %s19, 1
        %s592 = smul.addr %s591, 2
        %s593 = smul.addr %s592, 8
        %s594 = scalar_lea.vmem %s6, %s593
        %p595 = scmp.lt.s32.totalorder %s19, 1
        %s596 = scalar_select %p595, %s19, 1
        %s597 = smul.addr %s596, 2
        %s598 = smul.addr %s597, 8
        %s599 = scalar_lea.vmem %s7, %s598
        // Predicated region
        $region79: #{residual_block.4} parent=73 // pred_check
          %p600 = pneg %p147
        $region80: #{residual_block.4} parent=73 // pred_check_branch
          %602 = sbr.rel (%p600) target = $region82
        $region81: #{residual_block.4} parent=73 // pred_region
          %s603 = smul.addr %s19, 8
          %s604 = scalar_lea.vmem %s5, %s603
          // Predicated region
          $region83: #{residual_block.4} parent=81 // pred_check
            _
          $region84: #{residual_block.4} parent=81 // pred_check_branch
            %606 = sbr.rel (0) target = $region86
          $region85: #{residual_block.4} parent=81 // pred_region
            // Predicated region
            $region87: #{residual_block.4} parent=85 // pred_check
              _
            $region88: #{residual_block.4} parent=85 // pred_check_branch
              %608 = sbr.rel (0) target = $region90
            $region89: #{residual_block.4} parent=85 // pred_region
              // Predicated region
              $region102: #{residual_block.4} parent=89 // pred_check
                _
              $region103: #{residual_block.4} parent=89 // pred_check_branch
                %626 = sbr.rel (0) target = $region105
              $region104: #{residual_block.4} parent=89 // pred_region
                loop: start=0, step=1, limit=1
                $region106: #{residual_block.4} parent=104 // loop_pre_header
                  _
                $region107: #{residual_block.4} parent=104 // loop_header
                  %s628 = sphi 0, %s632
                  %p629 = scmp.ge.s32.totalorder %s628, 1
                  %s633 = sphi %s589, %s589
                  %s634 = sphi %s604, %s604
                $region108: #{residual_block.4} parent=104 // loop_header_branch
                  %631 = sbr.rel (%p629) target = $region112
                $region109: #{residual_block.4} parent=104 // loop_body
                  %v635 = vld [vmem:[%s633] sm:$0xff]
                  %636 = vst [vmem:[%s634] sm:$0xff] %v635
                  %v637 = vld [vmem:[%s633 + $0x8] sm:$0xff]
                  %638 = vst [vmem:[%s634 + $0x10] sm:$0xff] %v637
                $region110: #{residual_block.4} parent=104 // loop_footer
                  %s632 = sadd.s32 1, %s628
                $region111: #{residual_block.4} parent=104 // loop_footer_branch
                  %627 = sbr.rel target = $region107
                $region112: #{residual_block.4} parent=104 // loop_exit
                  _
              $region105: #{residual_block.4} parent=89 // pred_fallthru
                _
              // Predicated region
              $region113: #{residual_block.4} parent=89 // pred_check
                _
              $region114: #{residual_block.4} parent=89 // pred_check_branch
                %640 = sbr.rel target = $region116
              $region115: #{residual_block.4} parent=89 // pred_region
                _
              $region116: #{residual_block.4} parent=89 // pred_fallthru
                _
            $region90: #{residual_block.4} parent=85 // pred_fallthru
              _
            // Predicated region
            $region91: #{residual_block.4} parent=85 // pred_check
              _
            $region92: #{residual_block.4} parent=85 // pred_check_branch
              %610 = sbr.rel target = $region94
            $region93: #{residual_block.4} parent=85 // pred_region
              %s612 = ssub.s32 256, 1
              loop: start=0, step=1, limit=1
              $region95: #{residual_block.4} parent=93 // loop_pre_header
                _
              $region96: #{residual_block.4} parent=93 // loop_header
                %s614 = sphi 0, %s618
                %p615 = scmp.ge.s32.totalorder %s614, 1
                %s619 = sphi %s589, %s589
                %s620 = sphi %s604, %s604
              $region97: #{residual_block.4} parent=93 // loop_header_branch
                %617 = sbr.rel (%p615) target = $region101
              $region98: #{residual_block.4} parent=93 // loop_body
                %v621 = vld [vmem:[%s619] sm:%s612]
                %622 = vst [vmem:[%s620] sm:%s612] %v621
                %v623 = vld [vmem:[%s619 + $0x8] sm:%s612]
                %624 = vst [vmem:[%s620 + $0x10] sm:%s612] %v623
              $region99: #{residual_block.4} parent=93 // loop_footer
                %s618 = sadd.s32 1, %s614
              $region100: #{residual_block.4} parent=93 // loop_footer_branch
                %613 = sbr.rel target = $region96
              $region101: #{residual_block.4} parent=93 // loop_exit
                _
            $region94: #{residual_block.4} parent=85 // pred_fallthru
              _
          $region86: #{residual_block.4} parent=81 // pred_fallthru
            _
          %641 = vnop
        $region82: #{residual_block.4} parent=73 // pred_fallthru
          _
        // Predicated region
        $region117: #{residual_block.4} parent=73 // pred_check
          %p642 = pneg %p173
        $region118: #{residual_block.4} parent=73 // pred_check_branch
          %644 = sbr.rel (%p642) target = $region120
        $region119: #{residual_block.4} parent=73 // pred_region
          _
        $region120: #{residual_block.4} parent=73 // pred_fallthru
          _
        // Predicated region
        $region121: #{residual_block.4} parent=73 // pred_check
          %p645 = pneg %p199
        $region122: #{residual_block.4} parent=73 // pred_check_branch
          %647 = sbr.rel (%p645) target = $region124
        $region123: #{residual_block.4} parent=73 // pred_region
          _
        $region124: #{residual_block.4} parent=73 // pred_fallthru
          _
      $region74: #{residual_block.4} parent=5 // pred_fallthru
        _
      %p648 = scmp.le.s32.totalorder 2, %s14
      // Predicated region
      $region125: #{residual_block.4} parent=5 // pred_check
        %p649 = pneg %p648
      $region126: #{residual_block.4} parent=5 // pred_check_branch
        %651 = sbr.rel (%p649) target = $region128
      $region127: #{residual_block.4} parent=5 // pred_region
        %s652 = ssub.s32 %s14, 2
        // Predicated region
        $region129: #{residual_block.4} parent=127 // pred_check
          %p653 = pneg %p153
        $region130: #{residual_block.4} parent=127 // pred_check_branch
          %655 = sbr.rel (%p653) target = $region132
        $region131: #{residual_block.4} parent=127 // pred_region
          %s656 = sand.u32 %s138, 1
          %s657 = sand.u32 %s138, 1
          %s658 = smul.addr %s657, 16
          %s659 = scalar_lea.vmem [#allocation3], %s658
        $region132: #{residual_block.4} parent=127 // pred_fallthru
          _
        // Predicated region
        $region133: #{residual_block.4} parent=127 // pred_check
          %p660 = pneg %p179
        $region134: #{residual_block.4} parent=127 // pred_check_branch
          %662 = sbr.rel (%p660) target = $region136
        $region135: #{residual_block.4} parent=127 // pred_region
          %p663 = scmp.lt.s32.totalorder %s20, 1
          %s664 = scalar_select %p663, %s20, 1
          %s665 = smul.addr %s664, 2
          %s666 = smul.addr %s665, 8
          %s667 = scalar_lea.vmem %s6, %s666
        $region136: #{residual_block.4} parent=127 // pred_fallthru
          _
        // Predicated region
        $region137: #{residual_block.4} parent=127 // pred_check
          %p668 = pneg %p205
        $region138: #{residual_block.4} parent=127 // pred_check_branch
          %670 = sbr.rel (%p668) target = $region140
        $region139: #{residual_block.4} parent=127 // pred_region
          %p671 = scmp.lt.s32.totalorder %s20, 1
          %s672 = scalar_select %p671, %s20, 1
          %s673 = smul.addr %s672, 2
          %s674 = smul.addr %s673, 8
          %s675 = scalar_lea.vmem %s7, %s674
        $region140: #{residual_block.4} parent=127 // pred_fallthru
          _
      $region128: #{residual_block.4} parent=5 // pred_fallthru
        _
    $region6: #{residual_block.4} parent=1 // loop_footer
      %s18 = sadd.s32 1, %s14
    $region7: #{residual_block.4} parent=1 // loop_footer_branch
      %13 = sbr.rel target = $region3
    $region8: #{residual_block.4} parent=1 // loop_exit
      _

</llo_original>
